<compile_context>
chip_gen: v7x
topology: tpu7x:2x2x1
jax: 0.10.0
libtpu: 0.0.40
codegen_flags: <defaults>
</compile_context>

<pallas_src>
import jax
import jax.numpy as jnp
from jax.experimental import pallas as pl
from jax.experimental.pallas import tpu as pltpu

EMBED_SIZE = 1024
DROPOUT = 0.4          # unused in eval-mode forward
LN_EPS = 1e-5          # nn.LayerNorm default


def ffn_kernel(x_ref, w1_ref, b1_ref, w2_ref, b2_ref, gamma_ref, beta_ref, o_ref):
    """Fused FFN + residual + LayerNorm on a (tm, EMBED_SIZE) row-block."""
    x = x_ref[...]                                            # (tm, E) f32

    # Linear(EMBED, d) + ReLU — bf16 MXU operands, f32 accumulation.
    h = jnp.dot(x.astype(jnp.bfloat16), w1_ref[...],
                preferred_element_type=jnp.float32)
    h = jnp.maximum(h + b1_ref[...], 0.0)

    # Linear(d, EMBED) + bias; Dropout(eval)=identity; residual add in f32.
    y = x + jnp.dot(h.astype(jnp.bfloat16), w2_ref[...],
                    preferred_element_type=jnp.float32) + b2_ref[...]

    # LayerNorm over the feature axis (biased variance, like torch), all f32.
    mean = jnp.mean(y, axis=-1, keepdims=True)
    yc = y - mean
    var = jnp.mean(yc * yc, axis=-1, keepdims=True)
    scale = jax.lax.rsqrt(var + LN_EPS) * gamma_ref[...]      # fold inv*gamma
    o_ref[...] = (yc * scale + beta_ref[...]).astype(o_ref.dtype)


def _choose_tm(M, tm_req):
    """Pick a row tile: big for throughput, >=2 blocks when possible (v7x), exact
    single block for tiny inputs (block_shape == full array dim is always legal)."""
    tm_req = max(8, (tm_req // 8) * 8)
    if M <= 256:
        return M                        # one exact block, no masking needed
    if M <= tm_req:
        half = -(-M // 2)               # split so both v7x TensorCores get work
        return ((half + 7) // 8) * 8    # partial last block is masked by Pallas
    return tm_req


def ffn_forward(x, w1, b1, w2, b2, gamma, beta, *, tm=512):
    """x: (..., EMBED_SIZE) float32 -> same shape.

    tm: requested row tile; 512 is a good mem-bound default on v5e/v6e/v7x.
    M need not be a multiple of tm (the partial last block is masked — no pad copy).
    """
    orig_shape = x.shape
    E = orig_shape[-1]
    assert E == EMBED_SIZE
    x2 = x.reshape(-1, E)
    M = x2.shape[0]
    d = w1.shape[1]

    tm = _choose_tm(M, tm)
    n_blocks = pl.cdiv(M, tm)

    # bf16 weights for the MXU (halves weight DMA/VMEM); biases/affine stay f32.
    # (If weights are already bf16 — e.g. cast once outside a loop — no re-cast.)
    w1b = w1 if w1.dtype == jnp.bfloat16 else w1.astype(jnp.bfloat16)
    w2b = w2 if w2.dtype == jnp.bfloat16 else w2.astype(jnp.bfloat16)
    b1r = b1.reshape(1, d).astype(jnp.float32)
    b2r = b2.reshape(1, E).astype(jnp.float32)
    gr = gamma.reshape(1, E).astype(jnp.float32)
    br = beta.reshape(1, E).astype(jnp.float32)

    # Resident operands: constant index_map -> single-buffered, no re-fetch.
    resident = lambda shape: pl.BlockSpec(shape, lambda i: (0, 0),
                                          pipeline_mode=pl.Buffered(1))

    itemsize = jnp.dtype(x.dtype).itemsize
    # Double-buffered in+out slabs, resident bf16 weights, headroom for the
    # full-tile f32 intermediates Mosaic keeps live inside the body.
    vmem_need = (2 * 2 * tm * E * itemsize
                 + 2 * (E * d + d * E)
                 + 4 * E * 4
                 + 6 * tm * E * 4)
    vmem_limit = int(min(max(vmem_need, 32 << 20), 60 << 20))

    cost = pl.CostEstimate(
        flops=4 * M * E * d,                                   # two GEMMs
        transcendentals=0,
        bytes_accessed=2 * M * E * itemsize + 2 * (E * d + d * E))

    out = pl.pallas_call(
        ffn_kernel,
        out_shape=jax.ShapeDtypeStruct((M, E), x.dtype),
        grid_spec=pltpu.PrefetchScalarGridSpec(
            num_scalar_prefetch=0,
            grid=(n_blocks,),
            in_specs=[
                pl.BlockSpec((tm, E), lambda i: (i, 0)),   # x row-block (double-buffered)
                resident((E, d)),                          # W1 (bf16, resident)
                resident((1, d)),                          # b1
                resident((d, E)),                          # W2 (bf16, resident)
                resident((1, E)),                          # b2
                resident((1, E)),                          # gamma
                resident((1, E)),                          # beta
            ],
            out_specs=pl.BlockSpec((tm, E), lambda i: (i, 0)),
        ),
        compiler_params=pltpu.CompilerParams(
            dimension_semantics=("parallel",),             # shard row-blocks (v7x 2 TCs)
            vmem_limit_bytes=vmem_limit),
        cost_estimate=cost,
    )(x2, w1b, b1r, w2b, b2r, gr, br)

    return out.reshape(orig_shape)


def ffn_reference(x, w1, b1, w2, b2, gamma, beta):
    """Plain-JAX f32 reference mirroring the PyTorch eval-mode forward."""
    h = jnp.maximum(x @ w1 + b1, 0.0)
    z = h @ w2 + b2
    y = x + z
    mean = jnp.mean(y, axis=-1, keepdims=True)
    var = jnp.mean((y - mean) ** 2, axis=-1, keepdims=True)
    return (y - mean) * jax.lax.rsqrt(var + LN_EPS) * gamma + beta


if __name__ == "__main__":
    key = jax.random.PRNGKey(0)
    d = 128                     # hidden width of the FFN ("d" ctor arg)

    k = jax.random.split(key, 7)
    # deterministic parameter init (synthetic; ~ the scale of torch defaults)
    w1 = jax.random.normal(k[1], (EMBED_SIZE, d), jnp.float32) * (1.0 / EMBED_SIZE**0.5)
    b1 = jax.random.normal(k[2], (d,), jnp.float32) * 0.02
    w2 = jax.random.normal(k[3], (d, EMBED_SIZE), jnp.float32) * (1.0 / d**0.5)
    b2 = jax.random.normal(k[4], (EMBED_SIZE,), jnp.float32) * 0.02
    gamma = 1.0 + 0.1 * jax.random.normal(k[5], (EMBED_SIZE,), jnp.float32)
    beta = 0.1 * jax.random.normal(k[6], (EMBED_SIZE,), jnp.float32)

    # Test 1: small exact-tile case (batch=2, seq=8 -> 16 rows, single block).
    x = jax.random.normal(k[0], (2, 8, EMBED_SIZE), dtype=jnp.float32)
    out = jax.block_until_ready(ffn_forward(x, w1, b1, w2, b2, gamma, beta))
    ref = ffn_reference(x, w1, b1, w2, b2, gamma, beta)
    assert out.shape == x.shape
    # bf16 matmul operands (f32 accumulation) -> relaxed tolerance vs f32 reference.
    assert jnp.allclose(out, ref, atol=2e-2, rtol=2e-2), "mismatch vs reference (test 1)"

    # Test 2: ragged row count (3*100 = 300 rows -> 2 blocks, masked partial block).
    x2 = jax.random.normal(k[0], (3, 100, EMBED_SIZE), dtype=jnp.float32)
    out2 = jax.block_until_ready(ffn_forward(x2, w1, b1, w2, b2, gamma, beta))
    ref2 = ffn_reference(x2, w1, b1, w2, b2, gamma, beta)
    assert out2.shape == x2.shape
    assert jnp.allclose(out2, ref2, atol=2e-2, rtol=2e-2), "mismatch vs reference (test 2)"

    print("KERNEL_OK")
</pallas_src>

<mosaic_0001>
module attributes {stable_mosaic.version = 11 : i64} {
  func.func @ffn_kernel(%arg0: i32, %arg1: memref<16x1024xf32, #tpu.memory_space<vmem>>, %arg2: memref<1024x128xbf16, #tpu.memory_space<vmem>>, %arg3: memref<1x128xf32, #tpu.memory_space<vmem>>, %arg4: memref<128x1024xbf16, #tpu.memory_space<vmem>>, %arg5: memref<1x1024xf32, #tpu.memory_space<vmem>>, %arg6: memref<1x1024xf32, #tpu.memory_space<vmem>>, %arg7: memref<1x1024xf32, #tpu.memory_space<vmem>>, %arg8: memref<16x1024xf32, #tpu.memory_space<vmem>>) attributes {dimension_semantics = [#tpu.dimension_semantics<parallel>], iteration_bounds = array<i64: 1>, scalar_prefetch = 0 : i64, scratch_operands = 0 : i64, tpu.core_type = #tpu.core_type<tc>, window_params = [{transform_indices = @transform_0, window_bounds = array<i64: 16, 1024>}, {pipeline_mode = #tpu.pipeline_mode<synchronous>, transform_indices = @transform_1, window_bounds = array<i64: 1024, 128>}, {pipeline_mode = #tpu.pipeline_mode<synchronous>, transform_indices = @transform_2, window_bounds = array<i64: 1, 128>}, {pipeline_mode = #tpu.pipeline_mode<synchronous>, transform_indices = @transform_3, window_bounds = array<i64: 128, 1024>}, {pipeline_mode = #tpu.pipeline_mode<synchronous>, transform_indices = @transform_4, window_bounds = array<i64: 1, 1024>}, {pipeline_mode = #tpu.pipeline_mode<synchronous>, transform_indices = @transform_5, window_bounds = array<i64: 1, 1024>}, {pipeline_mode = #tpu.pipeline_mode<synchronous>, transform_indices = @transform_6, window_bounds = array<i64: 1, 1024>}, {transform_indices = @transform_7, window_bounds = array<i64: 16, 1024>}]} {
    %c0 = arith.constant 0 : index
    %c0_0 = arith.constant 0 : index
    %0 = vector.load %arg1[%c0, %c0_0] : memref<16x1024xf32, #tpu.memory_space<vmem>>, vector<16x1024xf32>
    %1 = arith.truncf %0 : vector<16x1024xf32> to vector<16x1024xbf16>
    %c0_1 = arith.constant 0 : index
    %c0_2 = arith.constant 0 : index
    %2 = vector.load %arg2[%c0_1, %c0_2] : memref<1024x128xbf16, #tpu.memory_space<vmem>>, vector<1024x128xbf16>
    %cst = arith.constant dense<0.000000e+00> : vector<16x128xf32>
    %3 = tpu.matmul %1, %2, %cst {dimension_numbers = #tpu.dot_dimension_numbers<[1], [0], [0], [1], [0, 0, 1, 1], [], []>} : vector<16x1024xbf16>, vector<1024x128xbf16>, vector<16x128xf32> -> vector<16x128xf32>
    %c0_3 = arith.constant 0 : index
    %c0_4 = arith.constant 0 : index
    %4 = vector.load %arg3[%c0_3, %c0_4] : memref<1x128xf32, #tpu.memory_space<vmem>>, vector<1x128xf32>
    %5 = vector.broadcast %4 : vector<1x128xf32> to vector<16x128xf32>
    %6 = arith.addf %3, %5 : vector<16x128xf32>
    %cst_5 = arith.constant 0.000000e+00 : f32
    %7 = vector.broadcast %cst_5 : f32 to vector<16x128xf32>
    %8 = arith.maximumf %6, %7 : vector<16x128xf32>
    %9 = arith.truncf %8 : vector<16x128xf32> to vector<16x128xbf16>
    %c0_6 = arith.constant 0 : index
    %c0_7 = arith.constant 0 : index
    %10 = vector.load %arg4[%c0_6, %c0_7] : memref<128x1024xbf16, #tpu.memory_space<vmem>>, vector<128x1024xbf16>
    %cst_8 = arith.constant dense<0.000000e+00> : vector<16x1024xf32>
    %11 = tpu.matmul %9, %10, %cst_8 {dimension_numbers = #tpu.dot_dimension_numbers<[1], [0], [0], [1], [0, 0, 1, 1], [], []>} : vector<16x128xbf16>, vector<128x1024xbf16>, vector<16x1024xf32> -> vector<16x1024xf32>
    %12 = arith.addf %0, %11 : vector<16x1024xf32>
    %c0_9 = arith.constant 0 : index
    %c0_10 = arith.constant 0 : index
    %13 = vector.load %arg5[%c0_9, %c0_10] : memref<1x1024xf32, #tpu.memory_space<vmem>>, vector<1x1024xf32>
    %14 = vector.broadcast %13 : vector<1x1024xf32> to vector<16x1024xf32>
    %15 = arith.addf %12, %14 : vector<16x1024xf32>
    %cst_11 = arith.constant dense<0.000000e+00> : vector<16xf32>
    %16 = vector.multi_reduction <add>, %15, %cst_11 [1] : vector<16x1024xf32> to vector<16xf32>
    %17 = vector.shape_cast %16 : vector<16xf32> to vector<16x1xf32>
    %cst_12 = arith.constant 1.024000e+03 : f32
    %18 = vector.broadcast %cst_12 : f32 to vector<16x1xf32>
    %19 = arith.divf %17, %18 : vector<16x1xf32>
    %20 = vector.broadcast %19 : vector<16x1xf32> to vector<16x1024xf32>
    %21 = arith.subf %15, %20 : vector<16x1024xf32>
    %22 = arith.mulf %21, %21 : vector<16x1024xf32>
    %cst_13 = arith.constant dense<0.000000e+00> : vector<16xf32>
    %23 = vector.multi_reduction <add>, %22, %cst_13 [1] : vector<16x1024xf32> to vector<16xf32>
    %24 = vector.shape_cast %23 : vector<16xf32> to vector<16x1xf32>
    %cst_14 = arith.constant 1.024000e+03 : f32
    %25 = vector.broadcast %cst_14 : f32 to vector<16x1xf32>
    %26 = arith.divf %24, %25 : vector<16x1xf32>
    %cst_15 = arith.constant 9.99999974E-6 : f32
    %27 = vector.broadcast %cst_15 : f32 to vector<16x1xf32>
    %28 = arith.addf %26, %27 : vector<16x1xf32>
    %29 = math.rsqrt %28 : vector<16x1xf32>
    %c0_16 = arith.constant 0 : index
    %c0_17 = arith.constant 0 : index
    %30 = vector.load %arg6[%c0_16, %c0_17] : memref<1x1024xf32, #tpu.memory_space<vmem>>, vector<1x1024xf32>
    %31 = vector.broadcast %29 : vector<16x1xf32> to vector<16x1024xf32>
    %32 = vector.broadcast %30 : vector<1x1024xf32> to vector<16x1024xf32>
    %33 = arith.mulf %31, %32 : vector<16x1024xf32>
    %34 = arith.mulf %21, %33 : vector<16x1024xf32>
    %c0_18 = arith.constant 0 : index
    %c0_19 = arith.constant 0 : index
    %35 = vector.load %arg7[%c0_18, %c0_19] : memref<1x1024xf32, #tpu.memory_space<vmem>>, vector<1x1024xf32>
    %36 = vector.broadcast %35 : vector<1x1024xf32> to vector<16x1024xf32>
    %37 = arith.addf %34, %36 : vector<16x1024xf32>
    %c0_20 = arith.constant 0 : index
    %c0_21 = arith.constant 0 : index
    %38 = vector.load %arg8[%c0_20, %c0_21] : memref<16x1024xf32, #tpu.memory_space<vmem>>, vector<16x1024xf32>
    tpu.vector_store %arg8[%c0_20, %c0_21], %37 {strides = array<i32>} : memref<16x1024xf32, #tpu.memory_space<vmem>>, vector<16x1024xf32>,
    return
  }
  func.func @transform_0(%arg0: i32) -> (i32, i32) {
    %c0_i32 = arith.constant 0 : i32
    %c0_i32_0 = arith.constant 0 : i32
    return %arg0, %c0_i32 : i32, i32
  }
  func.func @transform_1(%arg0: i32) -> (i32, i32) {
    %c0_i32 = arith.constant 0 : i32
    %c0_i32_0 = arith.constant 0 : i32
    %c0_i32_1 = arith.constant 0 : i32
    return %c0_i32, %c0_i32_0 : i32, i32
  }
  func.func @transform_2(%arg0: i32) -> (i32, i32) {
    %c0_i32 = arith.constant 0 : i32
    %c0_i32_0 = arith.constant 0 : i32
    %c0_i32_1 = arith.constant 0 : i32
    return %c0_i32, %c0_i32_0 : i32, i32
  }
  func.func @transform_3(%arg0: i32) -> (i32, i32) {
    %c0_i32 = arith.constant 0 : i32
    %c0_i32_0 = arith.constant 0 : i32
    %c0_i32_1 = arith.constant 0 : i32
    return %c0_i32, %c0_i32_0 : i32, i32
  }
  func.func @transform_4(%arg0: i32) -> (i32, i32) {
    %c0_i32 = arith.constant 0 : i32
    %c0_i32_0 = arith.constant 0 : i32
    %c0_i32_1 = arith.constant 0 : i32
    return %c0_i32, %c0_i32_0 : i32, i32
  }
  func.func @transform_5(%arg0: i32) -> (i32, i32) {
    %c0_i32 = arith.constant 0 : i32
    %c0_i32_0 = arith.constant 0 : i32
    %c0_i32_1 = arith.constant 0 : i32
    return %c0_i32, %c0_i32_0 : i32, i32
  }
  func.func @transform_6(%arg0: i32) -> (i32, i32) {
    %c0_i32 = arith.constant 0 : i32
    %c0_i32_0 = arith.constant 0 : i32
    %c0_i32_1 = arith.constant 0 : i32
    return %c0_i32, %c0_i32_0 : i32, i32
  }
  func.func @transform_7(%arg0: i32) -> (i32, i32) {
    %c0_i32 = arith.constant 0 : i32
    %c0_i32_0 = arith.constant 0 : i32
    return %arg0, %c0_i32 : i32, i32
  }
}

</mosaic_0001>

<llo_original>
// kernel: tpu_custom_call.1
$region0: #{tpu_custom_call.1}
  #allocation0 [shape = 'u32[]', space=smem, size = 0x4, offset = 0x4, fixed_abs, tag = 'smem constant byte address 0x4 - core index']
  #allocation1 [shape = 'u32[144,128]{1,0:T(1,128)}', space=vmem, size = 0x12000, scoped, tag = 'internal scratch']
  %s0 = inlined_call_operand.hbm [shape: f32[16,1024], index: 0, kind: input, shape index: {}]
  %s1 = inlined_call_operand.hbm [shape: bf16[1024,128], index: 1, kind: input, shape index: {}]
  %s2 = inlined_call_operand.vmem [shape: f32[1,128], index: 2, kind: input, shape index: {}]
  %s3 = inlined_call_operand.hbm [shape: bf16[128,1024], index: 3, kind: input, shape index: {}]
  %s4 = inlined_call_operand.vmem [shape: f32[1,1024], index: 4, kind: input, shape index: {}]
  %s5 = inlined_call_operand.vmem [shape: f32[1,1024], index: 5, kind: input, shape index: {}]
  %s6 = inlined_call_operand.hbm [shape: f32[1,1024], index: 6, kind: input, shape index: {}]
  %s7 = inlined_call_operand.hbm [shape: f32[16,1024], index: 7, kind: output, shape index: {}]
  %s8 = sld [smem:[#allocation0]]
  $region54: #{tpu_custom_call.1} parent=0
    _
  %s10 = ssub.s32 1, %s8
  %s11 = scalar_select 0, %s10, %s8
  $region1: #{tpu_custom_call.1} parent=0
    #allocation2 [shape = 'u8[65536]{0}', space=vmem, size = 0x10000, scoped, tag = 'input window, operand 0, single buffered']
    #allocation3 [shape = 's32[1]{0}', space=sflag, size = 0x4, scoped, tag = 'scoped memory for tpu_custom_call.1']
    #allocation4 [shape = 's32[1]{0}', space=sflag, size = 0x4, scoped, tag = 'scoped memory for tpu_custom_call.1']
    #allocation5 [shape = 'u8[262144]{0}', space=vmem, size = 0x40000, scoped, tag = 'input window, operand 1, single buffered']
    #allocation6 [shape = 's32[1]{0}', space=sflag, size = 0x4, scoped, tag = 'scoped memory for tpu_custom_call.1']
    #allocation7 [shape = 'u8[262144]{0}', space=vmem, size = 0x40000, scoped, tag = 'input window, operand 3, single buffered']
    #allocation8 [shape = 'u8[4096]{0}', space=vmem, size = 0x1000, scoped, tag = 'input window, operand 6, single buffered']
    #allocation9 [shape = 's32[1]{0}', space=sflag, size = 0x4, scoped, tag = 'scoped memory for tpu_custom_call.1']
    #allocation10 [shape = 'u8[65536]{0}', space=vmem, size = 0x10000, scoped, tag = 'output window, operand 0, single buffered']
    %12 = vsyncpa [#allocation3], 0
    %13 = vsyncpa [#allocation6], 0
    %14 = vsyncpa [#allocation9], 0
    %15 = vsyncpa [#allocation4], 0
    // Predicated region
    $region2: #{tpu_custom_call.1} parent=1 // pred_check
      _
    $region3: #{tpu_custom_call.1} parent=1 // pred_check_branch
      %17 = sbr.rel (0) target = $region5
    $region4: #{tpu_custom_call.1} parent=1 // pred_region
      %s19 = ssub.s32 2048, 2048
      %20 = vsyncadd [#allocation3], %s19
      %s21 = sshll.u32 [#allocation2], 4
      %s22 = int_to_ptr.vmem [resolvable:$true] %s21
      %27 = dma.hbm_to_vmem [thread:$0]  %s0, 2048, %s22, [#allocation3], 1024, 1024, 64
    $region5: #{tpu_custom_call.1} parent=1 // pred_fallthru
      _
    // Predicated region
    $region6: #{tpu_custom_call.1} parent=1 // pred_check
      _
    $region7: #{tpu_custom_call.1} parent=1 // pred_check_branch
      %29 = sbr.rel (0) target = $region9
    $region8: #{tpu_custom_call.1} parent=1 // pred_region
      %s31 = ssub.s32 8192, 8192
      %32 = vsyncadd [#allocation6], %s31
      %s33 = sshll.u32 [#allocation5], 4
      %s34 = int_to_ptr.vmem [resolvable:$true] %s33
      %39 = dma.hbm_to_vmem [thread:$0]  %s1, 8192, %s34, [#allocation6], 64, 64, 4
    $region9: #{tpu_custom_call.1} parent=1 // pred_fallthru
      _
    // Predicated region
    $region10: #{tpu_custom_call.1} parent=1 // pred_check
      _
    $region11: #{tpu_custom_call.1} parent=1 // pred_check_branch
      %41 = sbr.rel (0) target = $region13
    $region12: #{tpu_custom_call.1} parent=1 // pred_region
      _
    $region13: #{tpu_custom_call.1} parent=1 // pred_fallthru
      _
    // Predicated region
    $region14: #{tpu_custom_call.1} parent=1 // pred_check
      _
    $region15: #{tpu_custom_call.1} parent=1 // pred_check_branch
      %43 = sbr.rel (0) target = $region17
    $region16: #{tpu_custom_call.1} parent=1 // pred_region
      %s45 = ssub.s32 8192, 8192
      %46 = vsyncadd [#allocation6], %s45
      %s47 = sshll.u32 [#allocation7], 4
      %s48 = int_to_ptr.vmem [resolvable:$true] %s47
      %53 = dma.hbm_to_vmem [thread:$0]  %s3, 8192, %s48, [#allocation6], 512, 512, 32
    $region17: #{tpu_custom_call.1} parent=1 // pred_fallthru
      _
    // Predicated region
    $region18: #{tpu_custom_call.1} parent=1 // pred_check
      _
    $region19: #{tpu_custom_call.1} parent=1 // pred_check_branch
      %55 = sbr.rel (0) target = $region21
    $region20: #{tpu_custom_call.1} parent=1 // pred_region
      _
    $region21: #{tpu_custom_call.1} parent=1 // pred_fallthru
      _
    // Predicated region
    $region22: #{tpu_custom_call.1} parent=1 // pred_check
      _
    $region23: #{tpu_custom_call.1} parent=1 // pred_check_branch
      %57 = sbr.rel (0) target = $region25
    $region24: #{tpu_custom_call.1} parent=1 // pred_region
      _
    $region25: #{tpu_custom_call.1} parent=1 // pred_fallthru
      _
    // Predicated region
    $region26: #{tpu_custom_call.1} parent=1 // pred_check
      _
    $region27: #{tpu_custom_call.1} parent=1 // pred_check_branch
      %59 = sbr.rel (0) target = $region29
    $region28: #{tpu_custom_call.1} parent=1 // pred_region
      %s61 = ssub.s32 128, 128
      %62 = vsyncadd [#allocation9], %s61
      %s64 = sshll.u32 [#allocation8], 4
      %s65 = int_to_ptr.vmem [resolvable:$true] %s64
      %67 = dma.hbm_to_vmem [thread:$0]  %s6, 128, %s65, [#allocation9]
    $region29: #{tpu_custom_call.1} parent=1 // pred_fallthru
      _
    // Predicated region
    $region30: #{tpu_custom_call.1} parent=1 // pred_check
      _
    $region31: #{tpu_custom_call.1} parent=1 // pred_check_branch
      %69 = sbr.rel (0) target = $region33
    $region32: #{tpu_custom_call.1} parent=1 // pred_region
      %70 = dma.done [#allocation3], 2048
    $region33: #{tpu_custom_call.1} parent=1 // pred_fallthru
      _
    // Predicated region
    $region34: #{tpu_custom_call.1} parent=1 // pred_check
      _
    $region35: #{tpu_custom_call.1} parent=1 // pred_check_branch
      %72 = sbr.rel (0) target = $region37
    $region36: #{tpu_custom_call.1} parent=1 // pred_region
      %73 = dma.done [#allocation6], 8192
    $region37: #{tpu_custom_call.1} parent=1 // pred_fallthru
      _
    // Predicated region
    $region38: #{tpu_custom_call.1} parent=1 // pred_check
      _
    $region39: #{tpu_custom_call.1} parent=1 // pred_check_branch
      %75 = sbr.rel (0) target = $region41
    $region40: #{tpu_custom_call.1} parent=1 // pred_region
      %76 = dma.done [#allocation6], 8192
    $region41: #{tpu_custom_call.1} parent=1 // pred_fallthru
      _
    // Predicated region
    $region42: #{tpu_custom_call.1} parent=1 // pred_check
      _
    $region43: #{tpu_custom_call.1} parent=1 // pred_check_branch
      %78 = sbr.rel (0) target = $region45
    $region44: #{tpu_custom_call.1} parent=1 // pred_region
      %79 = dma.done [#allocation9], 128
    $region45: #{tpu_custom_call.1} parent=1 // pred_fallthru
      _
    %v81 = vld [vmem:[#allocation2] sm:$0xff]
    %v82 = vld [vmem:[#allocation2 + $0x8] sm:$0xff]
    %v83 = vld [vmem:[#allocation2 + $0x10] sm:$0xff]
    %v84 = vld [vmem:[#allocation2 + $0x18] sm:$0xff]
    %v85 = vld [vmem:[#allocation2 + $0x20] sm:$0xff]
    %v86 = vld [vmem:[#allocation2 + $0x28] sm:$0xff]
    %v87 = vld [vmem:[#allocation2 + $0x30] sm:$0xff]
    %v88 = vld [vmem:[#allocation2 + $0x38] sm:$0xff]
    %v89 = vld [vmem:[#allocation2 + $0x40] sm:$0xff]
    %v90 = vld [vmem:[#allocation2 + $0x48] sm:$0xff]
    %v91 = vld [vmem:[#allocation2 + $0x50] sm:$0xff]
    %v92 = vld [vmem:[#allocation2 + $0x58] sm:$0xff]
    %v93 = vld [vmem:[#allocation2 + $0x60] sm:$0xff]
    %v94 = vld [vmem:[#allocation2 + $0x68] sm:$0xff]
    %v95 = vld [vmem:[#allocation2 + $0x70] sm:$0xff]
    %v96 = vld [vmem:[#allocation2 + $0x78] sm:$0xff]
    %v97 = vpack.c.bf16 %v89, %v81
    %v98 = vpack.c.bf16 %v90, %v82
    %v99 = vpack.c.bf16 %v91, %v83
    %v100 = vpack.c.bf16 %v92, %v84
    %v101 = vpack.c.bf16 %v93, %v85
    %v102 = vpack.c.bf16 %v94, %v86
    %v103 = vpack.c.bf16 %v95, %v87
    %v104 = vpack.c.bf16 %v96, %v88
    %v105 = vld [vmem:[#allocation5] sm:$0xf]
    %v106 = vld [vmem:[#allocation5 + $0x4] sm:$0xf]
    %v107 = vld [vmem:[#allocation5 + $0x8] sm:$0xf]
    %v108 = vld [vmem:[#allocation5 + $0xc] sm:$0xf]
    %v109 = vld [vmem:[#allocation5 + $0x10] sm:$0xf]
    %v110 = vld [vmem:[#allocation5 + $0x14] sm:$0xf]
    %v111 = vld [vmem:[#allocation5 + $0x18] sm:$0xf]
    %v112 = vld [vmem:[#allocation5 + $0x1c] sm:$0xf]
    %v113 = vld [vmem:[#allocation5 + $0x20] sm:$0xf]
    %v114 = vld [vmem:[#allocation5 + $0x24] sm:$0xf]
    %v115 = vld [vmem:[#allocation5 + $0x28] sm:$0xf]
    %v116 = vld [vmem:[#allocation5 + $0x2c] sm:$0xf]
    %v117 = vld [vmem:[#allocation5 + $0x30] sm:$0xf]
    %v118 = vld [vmem:[#allocation5 + $0x34] sm:$0xf]
    %v119 = vld [vmem:[#allocation5 + $0x38] sm:$0xf]
    %v120 = vld [vmem:[#allocation5 + $0x3c] sm:$0xf]
    %v121 = vld [vmem:[#allocation5 + $0x40] sm:$0xf]
    %v122 = vld [vmem:[#allocation5 + $0x44] sm:$0xf]
    %v123 = vld [vmem:[#allocation5 + $0x48] sm:$0xf]
    %v124 = vld [vmem:[#allocation5 + $0x4c] sm:$0xf]
    %v125 = vld [vmem:[#allocation5 + $0x50] sm:$0xf]
    %v126 = vld [vmem:[#allocation5 + $0x54] sm:$0xf]
    %v127 = vld [vmem:[#allocation5 + $0x58] sm:$0xf]
    %v128 = vld [vmem:[#allocation5 + $0x5c] sm:$0xf]
    %v129 = vld [vmem:[#allocation5 + $0x60] sm:$0xf]
    %v130 = vld [vmem:[#allocation5 + $0x64] sm:$0xf]
    %v131 = vld [vmem:[#allocation5 + $0x68] sm:$0xf]
    %v132 = vld [vmem:[#allocation5 + $0x6c] sm:$0xf]
    %v133 = vld [vmem:[#allocation5 + $0x70] sm:$0xf]
    %v134 = vld [vmem:[#allocation5 + $0x74] sm:$0xf]
    %v135 = vld [vmem:[#allocation5 + $0x78] sm:$0xf]
    %v136 = vld [vmem:[#allocation5 + $0x7c] sm:$0xf]
    %v137 = vld [vmem:[#allocation5 + $0x80] sm:$0xf]
    %v138 = vld [vmem:[#allocation5 + $0x84] sm:$0xf]
    %v139 = vld [vmem:[#allocation5 + $0x88] sm:$0xf]
    %v140 = vld [vmem:[#allocation5 + $0x8c] sm:$0xf]
    %v141 = vld [vmem:[#allocation5 + $0x90] sm:$0xf]
    %v142 = vld [vmem:[#allocation5 + $0x94] sm:$0xf]
    %v143 = vld [vmem:[#allocation5 + $0x98] sm:$0xf]
    %v144 = vld [vmem:[#allocation5 + $0x9c] sm:$0xf]
    %v145 = vld [vmem:[#allocation5 + $0xa0] sm:$0xf]
    %v146 = vld [vmem:[#allocation5 + $0xa4] sm:$0xf]
    %v147 = vld [vmem:[#allocation5 + $0xa8] sm:$0xf]
    %v148 = vld [vmem:[#allocation5 + $0xac] sm:$0xf]
    %v149 = vld [vmem:[#allocation5 + $0xb0] sm:$0xf]
    %v150 = vld [vmem:[#allocation5 + $0xb4] sm:$0xf]
    %v151 = vld [vmem:[#allocation5 + $0xb8] sm:$0xf]
    %v152 = vld [vmem:[#allocation5 + $0xbc] sm:$0xf]
    %v153 = vld [vmem:[#allocation5 + $0xc0] sm:$0xf]
    %v154 = vld [vmem:[#allocation5 + $0xc4] sm:$0xf]
    %v155 = vld [vmem:[#allocation5 + $0xc8] sm:$0xf]
    %v156 = vld [vmem:[#allocation5 + $0xcc] sm:$0xf]
    %v157 = vld [vmem:[#allocation5 + $0xd0] sm:$0xf]
    %v158 = vld [vmem:[#allocation5 + $0xd4] sm:$0xf]
    %v159 = vld [vmem:[#allocation5 + $0xd8] sm:$0xf]
    %v160 = vld [vmem:[#allocation5 + $0xdc] sm:$0xf]
    %v161 = vld [vmem:[#allocation5 + $0xe0] sm:$0xf]
    %v162 = vld [vmem:[#allocation5 + $0xe4] sm:$0xf]
    %v163 = vld [vmem:[#allocation5 + $0xe8] sm:$0xf]
    %v164 = vld [vmem:[#allocation5 + $0xec] sm:$0xf]
    %v165 = vld [vmem:[#allocation5 + $0xf0] sm:$0xf]
    %v166 = vld [vmem:[#allocation5 + $0xf4] sm:$0xf]
    %v167 = vld [vmem:[#allocation5 + $0xf8] sm:$0xf]
    %v168 = vld [vmem:[#allocation5 + $0xfc] sm:$0xf]
    %v169 = vld [vmem:[#allocation5 + $0x100] sm:$0xf]
    %v170 = vld [vmem:[#allocation5 + $0x104] sm:$0xf]
    %v171 = vld [vmem:[#allocation5 + $0x108] sm:$0xf]
    %v172 = vld [vmem:[#allocation5 + $0x10c] sm:$0xf]
    %v173 = vld [vmem:[#allocation5 + $0x110] sm:$0xf]
    %v174 = vld [vmem:[#allocation5 + $0x114] sm:$0xf]
    %v175 = vld [vmem:[#allocation5 + $0x118] sm:$0xf]
    %v176 = vld [vmem:[#allocation5 + $0x11c] sm:$0xf]
    %v177 = vld [vmem:[#allocation5 + $0x120] sm:$0xf]
    %v178 = vld [vmem:[#allocation5 + $0x124] sm:$0xf]
    %v179 = vld [vmem:[#allocation5 + $0x128] sm:$0xf]
    %v180 = vld [vmem:[#allocation5 + $0x12c] sm:$0xf]
    %v181 = vld [vmem:[#allocation5 + $0x130] sm:$0xf]
    %v182 = vld [vmem:[#allocation5 + $0x134] sm:$0xf]
    %v183 = vld [vmem:[#allocation5 + $0x138] sm:$0xf]
    %v184 = vld [vmem:[#allocation5 + $0x13c] sm:$0xf]
    %v185 = vld [vmem:[#allocation5 + $0x140] sm:$0xf]
    %v186 = vld [vmem:[#allocation5 + $0x144] sm:$0xf]
    %v187 = vld [vmem:[#allocation5 + $0x148] sm:$0xf]
    %v188 = vld [vmem:[#allocation5 + $0x14c] sm:$0xf]
    %v189 = vld [vmem:[#allocation5 + $0x150] sm:$0xf]
    %v190 = vld [vmem:[#allocation5 + $0x154] sm:$0xf]
    %v191 = vld [vmem:[#allocation5 + $0x158] sm:$0xf]
    %v192 = vld [vmem:[#allocation5 + $0x15c] sm:$0xf]
    %v193 = vld [vmem:[#allocation5 + $0x160] sm:$0xf]
    %v194 = vld [vmem:[#allocation5 + $0x164] sm:$0xf]
    %v195 = vld [vmem:[#allocation5 + $0x168] sm:$0xf]
    %v196 = vld [vmem:[#allocation5 + $0x16c] sm:$0xf]
    %v197 = vld [vmem:[#allocation5 + $0x170] sm:$0xf]
    %v198 = vld [vmem:[#allocation5 + $0x174] sm:$0xf]
    %v199 = vld [vmem:[#allocation5 + $0x178] sm:$0xf]
    %v200 = vld [vmem:[#allocation5 + $0x17c] sm:$0xf]
    %v201 = vld [vmem:[#allocation5 + $0x180] sm:$0xf]
    %v202 = vld [vmem:[#allocation5 + $0x184] sm:$0xf]
    %v203 = vld [vmem:[#allocation5 + $0x188] sm:$0xf]
    %v204 = vld [vmem:[#allocation5 + $0x18c] sm:$0xf]
    %v205 = vld [vmem:[#allocation5 + $0x190] sm:$0xf]
    %v206 = vld [vmem:[#allocation5 + $0x194] sm:$0xf]
    %v207 = vld [vmem:[#allocation5 + $0x198] sm:$0xf]
    %v208 = vld [vmem:[#allocation5 + $0x19c] sm:$0xf]
    %v209 = vld [vmem:[#allocation5 + $0x1a0] sm:$0xf]
    %v210 = vld [vmem:[#allocation5 + $0x1a4] sm:$0xf]
    %v211 = vld [vmem:[#allocation5 + $0x1a8] sm:$0xf]
    %v212 = vld [vmem:[#allocation5 + $0x1ac] sm:$0xf]
    %v213 = vld [vmem:[#allocation5 + $0x1b0] sm:$0xf]
    %v214 = vld [vmem:[#allocation5 + $0x1b4] sm:$0xf]
    %v215 = vld [vmem:[#allocation5 + $0x1b8] sm:$0xf]
    %v216 = vld [vmem:[#allocation5 + $0x1bc] sm:$0xf]
    %v217 = vld [vmem:[#allocation5 + $0x1c0] sm:$0xf]
    %v218 = vld [vmem:[#allocation5 + $0x1c4] sm:$0xf]
    %v219 = vld [vmem:[#allocation5 + $0x1c8] sm:$0xf]
    %v220 = vld [vmem:[#allocation5 + $0x1cc] sm:$0xf]
    %v221 = vld [vmem:[#allocation5 + $0x1d0] sm:$0xf]
    %v222 = vld [vmem:[#allocation5 + $0x1d4] sm:$0xf]
    %v223 = vld [vmem:[#allocation5 + $0x1d8] sm:$0xf]
    %v224 = vld [vmem:[#allocation5 + $0x1dc] sm:$0xf]
    %v225 = vld [vmem:[#allocation5 + $0x1e0] sm:$0xf]
    %v226 = vld [vmem:[#allocation5 + $0x1e4] sm:$0xf]
    %v227 = vld [vmem:[#allocation5 + $0x1e8] sm:$0xf]
    %v228 = vld [vmem:[#allocation5 + $0x1ec] sm:$0xf]
    %v229 = vld [vmem:[#allocation5 + $0x1f0] sm:$0xf]
    %v230 = vld [vmem:[#allocation5 + $0x1f4] sm:$0xf]
    %v231 = vld [vmem:[#allocation5 + $0x1f8] sm:$0xf]
    %v232 = vld [vmem:[#allocation5 + $0x1fc] sm:$0xf]
    %v233 = vld [vmem:[%s2] sm:$0x1]
    %v235 = vlaneseq
    %v236 = vshrl.u32 %v235, 7
    %v237 = vsub.s32 0, %v236
    %v238 = vrot.slane %v233, %v237
    %v368 = vunpack.c.l.b16 %v105
    %v369 = vunpack.c.l.b16 %v106
    %v370 = vunpack.c.l.b16 %v107
    %v371 = vunpack.c.l.b16 %v108
    %v372 = vunpack.c.l.b16 %v109
    %v373 = vunpack.c.l.b16 %v110
    %v374 = vunpack.c.l.b16 %v111
    %v375 = vunpack.c.l.b16 %v112
    %v376 = vunpack.c.l.b16 %v113
    %v377 = vunpack.c.l.b16 %v114
    %v378 = vunpack.c.l.b16 %v115
    %v379 = vunpack.c.l.b16 %v116
    %v380 = vunpack.c.l.b16 %v117
    %v381 = vunpack.c.l.b16 %v118
    %v382 = vunpack.c.l.b16 %v119
    %v383 = vunpack.c.l.b16 %v120
    %v384 = vunpack.c.l.b16 %v121
    %v385 = vunpack.c.l.b16 %v122
    %v386 = vunpack.c.l.b16 %v123
    %v387 = vunpack.c.l.b16 %v124
    %v388 = vunpack.c.l.b16 %v125
    %v389 = vunpack.c.l.b16 %v126
    %v390 = vunpack.c.l.b16 %v127
    %v391 = vunpack.c.l.b16 %v128
    %v392 = vunpack.c.l.b16 %v129
    %v393 = vunpack.c.l.b16 %v130
    %v394 = vunpack.c.l.b16 %v131
    %v395 = vunpack.c.l.b16 %v132
    %v396 = vunpack.c.l.b16 %v133
    %v397 = vunpack.c.l.b16 %v134
    %v398 = vunpack.c.l.b16 %v135
    %v399 = vunpack.c.l.b16 %v136
    %v400 = vunpack.c.l.b16 %v137
    %v401 = vunpack.c.l.b16 %v138
    %v402 = vunpack.c.l.b16 %v139
    %v403 = vunpack.c.l.b16 %v140
    %v404 = vunpack.c.l.b16 %v141
    %v405 = vunpack.c.l.b16 %v142
    %v406 = vunpack.c.l.b16 %v143
    %v407 = vunpack.c.l.b16 %v144
    %v408 = vunpack.c.l.b16 %v145
    %v409 = vunpack.c.l.b16 %v146
    %v410 = vunpack.c.l.b16 %v147
    %v411 = vunpack.c.l.b16 %v148
    %v412 = vunpack.c.l.b16 %v149
    %v413 = vunpack.c.l.b16 %v150
    %v414 = vunpack.c.l.b16 %v151
    %v415 = vunpack.c.l.b16 %v152
    %v416 = vunpack.c.l.b16 %v153
    %v417 = vunpack.c.l.b16 %v154
    %v418 = vunpack.c.l.b16 %v155
    %v419 = vunpack.c.l.b16 %v156
    %v420 = vunpack.c.l.b16 %v157
    %v421 = vunpack.c.l.b16 %v158
    %v422 = vunpack.c.l.b16 %v159
    %v423 = vunpack.c.l.b16 %v160
    %v424 = vunpack.c.l.b16 %v161
    %v425 = vunpack.c.l.b16 %v162
    %v426 = vunpack.c.l.b16 %v163
    %v427 = vunpack.c.l.b16 %v164
    %v428 = vunpack.c.l.b16 %v165
    %v429 = vunpack.c.l.b16 %v166
    %v430 = vunpack.c.l.b16 %v167
    %v431 = vunpack.c.l.b16 %v168
    %v432 = vunpack.c.l.b16 %v169
    %v433 = vunpack.c.l.b16 %v170
    %v434 = vunpack.c.l.b16 %v171
    %v435 = vunpack.c.l.b16 %v172
    %v436 = vunpack.c.l.b16 %v173
    %v437 = vunpack.c.l.b16 %v174
    %v438 = vunpack.c.l.b16 %v175
    %v439 = vunpack.c.l.b16 %v176
    %v440 = vunpack.c.l.b16 %v177
    %v441 = vunpack.c.l.b16 %v178
    %v442 = vunpack.c.l.b16 %v179
    %v443 = vunpack.c.l.b16 %v180
    %v444 = vunpack.c.l.b16 %v181
    %v445 = vunpack.c.l.b16 %v182
    %v446 = vunpack.c.l.b16 %v183
    %v447 = vunpack.c.l.b16 %v184
    %v448 = vunpack.c.l.b16 %v185
    %v449 = vunpack.c.l.b16 %v186
    %v450 = vunpack.c.l.b16 %v187
    %v451 = vunpack.c.l.b16 %v188
    %v452 = vunpack.c.l.b16 %v189
    %v453 = vunpack.c.l.b16 %v190
    %v454 = vunpack.c.l.b16 %v191
    %v455 = vunpack.c.l.b16 %v192
    %v456 = vunpack.c.l.b16 %v193
    %v457 = vunpack.c.l.b16 %v194
    %v458 = vunpack.c.l.b16 %v195
    %v459 = vunpack.c.l.b16 %v196
    %v460 = vunpack.c.l.b16 %v197
    %v461 = vunpack.c.l.b16 %v198
    %v462 = vunpack.c.l.b16 %v199
    %v463 = vunpack.c.l.b16 %v200
    %v464 = vunpack.c.l.b16 %v201
    %v465 = vunpack.c.l.b16 %v202
    %v466 = vunpack.c.l.b16 %v203
    %v467 = vunpack.c.l.b16 %v204
    %v468 = vunpack.c.l.b16 %v205
    %v469 = vunpack.c.l.b16 %v206
    %v470 = vunpack.c.l.b16 %v207
    %v471 = vunpack.c.l.b16 %v208
    %v472 = vunpack.c.l.b16 %v209
    %v473 = vunpack.c.l.b16 %v210
    %v474 = vunpack.c.l.b16 %v211
    %v475 = vunpack.c.l.b16 %v212
    %v476 = vunpack.c.l.b16 %v213
    %v477 = vunpack.c.l.b16 %v214
    %v478 = vunpack.c.l.b16 %v215
    %v479 = vunpack.c.l.b16 %v216
    %v480 = vunpack.c.l.b16 %v217
    %v481 = vunpack.c.l.b16 %v218
    %v482 = vunpack.c.l.b16 %v219
    %v483 = vunpack.c.l.b16 %v220
    %v484 = vunpack.c.l.b16 %v221
    %v485 = vunpack.c.l.b16 %v222
    %v486 = vunpack.c.l.b16 %v223
    %v487 = vunpack.c.l.b16 %v224
    %v488 = vunpack.c.l.b16 %v225
    %v489 = vunpack.c.l.b16 %v226
    %v490 = vunpack.c.l.b16 %v227
    %v491 = vunpack.c.l.b16 %v228
    %v492 = vunpack.c.l.b16 %v229
    %v493 = vunpack.c.l.b16 %v230
    %v494 = vunpack.c.l.b16 %v231
    %v495 = vunpack.c.l.b16 %v232
    %v496 = vpack.c.b16 %v369, %v368
    %v497 = vpack.c.b16 %v371, %v370
    %v498 = vpack.c.b16 %v373, %v372
    %v499 = vpack.c.b16 %v375, %v374
    %v500 = vpack.c.b16 %v377, %v376
    %v501 = vpack.c.b16 %v379, %v378
    %v502 = vpack.c.b16 %v381, %v380
    %v503 = vpack.c.b16 %v383, %v382
    %v504 = vpack.c.b16 %v385, %v384
    %v505 = vpack.c.b16 %v387, %v386
    %v506 = vpack.c.b16 %v389, %v388
    %v507 = vpack.c.b16 %v391, %v390
    %v508 = vpack.c.b16 %v393, %v392
    %v509 = vpack.c.b16 %v395, %v394
    %v510 = vpack.c.b16 %v397, %v396
    %v511 = vpack.c.b16 %v399, %v398
    %v512 = vpack.c.b16 %v401, %v400
    %v513 = vpack.c.b16 %v403, %v402
    %v514 = vpack.c.b16 %v405, %v404
    %v515 = vpack.c.b16 %v407, %v406
    %v516 = vpack.c.b16 %v409, %v408
    %v517 = vpack.c.b16 %v411, %v410
    %v518 = vpack.c.b16 %v413, %v412
    %v519 = vpack.c.b16 %v415, %v414
    %v520 = vpack.c.b16 %v417, %v416
    %v521 = vpack.c.b16 %v419, %v418
    %v522 = vpack.c.b16 %v421, %v420
    %v523 = vpack.c.b16 %v423, %v422
    %v524 = vpack.c.b16 %v425, %v424
    %v525 = vpack.c.b16 %v427, %v426
    %v526 = vpack.c.b16 %v429, %v428
    %v527 = vpack.c.b16 %v431, %v430
    %v528 = vpack.c.b16 %v433, %v432
    %v529 = vpack.c.b16 %v435, %v434
    %v530 = vpack.c.b16 %v437, %v436
    %v531 = vpack.c.b16 %v439, %v438
    %v532 = vpack.c.b16 %v441, %v440
    %v533 = vpack.c.b16 %v443, %v442
    %v534 = vpack.c.b16 %v445, %v444
    %v535 = vpack.c.b16 %v447, %v446
    %v536 = vpack.c.b16 %v449, %v448
    %v537 = vpack.c.b16 %v451, %v450
    %v538 = vpack.c.b16 %v453, %v452
    %v539 = vpack.c.b16 %v455, %v454
    %v540 = vpack.c.b16 %v457, %v456
    %v541 = vpack.c.b16 %v459, %v458
    %v542 = vpack.c.b16 %v461, %v460
    %v543 = vpack.c.b16 %v463, %v462
    %v544 = vpack.c.b16 %v465, %v464
    %v545 = vpack.c.b16 %v467, %v466
    %v546 = vpack.c.b16 %v469, %v468
    %v547 = vpack.c.b16 %v471, %v470
    %v548 = vpack.c.b16 %v473, %v472
    %v549 = vpack.c.b16 %v475, %v474
    %v550 = vpack.c.b16 %v477, %v476
    %v551 = vpack.c.b16 %v479, %v478
    %v552 = vpack.c.b16 %v481, %v480
    %v553 = vpack.c.b16 %v483, %v482
    %v554 = vpack.c.b16 %v485, %v484
    %v555 = vpack.c.b16 %v487, %v486
    %v556 = vpack.c.b16 %v489, %v488
    %v557 = vpack.c.b16 %v491, %v490
    %v558 = vpack.c.b16 %v493, %v492
    %v559 = vpack.c.b16 %v495, %v494
    %624 = vmatprep.subr.bf16.mxu0 0
    %625 = vmatpush1.bf16.msra.mxu0 %v496
    %626 = vmatprep.subr.bf16.mxu0 0
    %627 = vmatpush1.bf16.msra.mxu0 %v497
    %628 = vmatprep.subr.bf16.mxu0 0
    %629 = vmatpush1.bf16.msra.mxu0 %v498
    %630 = vmatprep.subr.bf16.mxu0 0
    %631 = vmatpush1.bf16.msra.mxu0 %v499
    %632 = vmatprep.subr.bf16.mxu0 0
    %633 = vmatpush1.bf16.msra.mxu0 %v500
    %634 = vmatprep.subr.bf16.mxu0 0
    %635 = vmatpush1.bf16.msra.mxu0 %v501
    %636 = vmatprep.subr.bf16.mxu0 0
    %637 = vmatpush1.bf16.msra.mxu0 %v502
    %638 = vmatprep.subr.bf16.mxu0 0
    %639 = vmatpush1.bf16.msra.mxu0 %v503
    %640 = vmatprep.subr.bf16.mxu0 0
    %641 = vmatpush1.bf16.msra.mxu0 %v504
    %642 = vmatprep.subr.bf16.mxu0 0
    %643 = vmatpush1.bf16.msra.mxu0 %v505
    %644 = vmatprep.subr.bf16.mxu0 0
    %645 = vmatpush1.bf16.msra.mxu0 %v506
    %646 = vmatprep.subr.bf16.mxu0 0
    %647 = vmatpush1.bf16.msra.mxu0 %v507
    %648 = vmatprep.subr.bf16.mxu0 0
    %649 = vmatpush1.bf16.msra.mxu0 %v508
    %650 = vmatprep.subr.bf16.mxu0 0
    %651 = vmatpush1.bf16.msra.mxu0 %v509
    %652 = vmatprep.subr.bf16.mxu0 0
    %653 = vmatpush1.bf16.msra.mxu0 %v510
    %654 = vmatprep.subr.bf16.mxu0 0
    %655 = vmatpush1.bf16.msra.mxu0 %v511
    %656 = vmatprep.mubr.bf16.mxu0 %v98
    %657 = vmatmul.mubr.bf16.gmra.mrb[0].mxu0 %v97
    %v658 = vpop.f32.mrb[0].mxu0
    %v659 = vadd.f32 %v238, %v658
    %v660 = vpop.f32.mrb[0].mxu0
    %v661 = vpop.f32.mrb[0].mxu0
    %v662 = vadd.f32 %v238, %v661
    %v663 = vpop.f32.mrb[0].mxu0
    %664 = vdwg.mxu0
    %665 = vmatprep.subr.bf16.mxu0 0
    %666 = vmatpush1.bf16.msra.mxu0 %v512
    %667 = vmatprep.subr.bf16.mxu0 0
    %668 = vmatpush1.bf16.msra.mxu0 %v513
    %669 = vmatprep.subr.bf16.mxu0 0
    %670 = vmatpush1.bf16.msra.mxu0 %v514
    %671 = vmatprep.subr.bf16.mxu0 0
    %672 = vmatpush1.bf16.msra.mxu0 %v515
    %673 = vmatprep.subr.bf16.mxu0 0
    %674 = vmatpush1.bf16.msra.mxu0 %v516
    %675 = vmatprep.subr.bf16.mxu0 0
    %676 = vmatpush1.bf16.msra.mxu0 %v517
    %677 = vmatprep.subr.bf16.mxu0 0
    %678 = vmatpush1.bf16.msra.mxu0 %v518
    %679 = vmatprep.subr.bf16.mxu0 0
    %680 = vmatpush1.bf16.msra.mxu0 %v519
    %681 = vmatprep.subr.bf16.mxu0 0
    %682 = vmatpush1.bf16.msra.mxu0 %v520
    %683 = vmatprep.subr.bf16.mxu0 0
    %684 = vmatpush1.bf16.msra.mxu0 %v521
    %685 = vmatprep.subr.bf16.mxu0 0
    %686 = vmatpush1.bf16.msra.mxu0 %v522
    %687 = vmatprep.subr.bf16.mxu0 0
    %688 = vmatpush1.bf16.msra.mxu0 %v523
    %689 = vmatprep.subr.bf16.mxu0 0
    %690 = vmatpush1.bf16.msra.mxu0 %v524
    %691 = vmatprep.subr.bf16.mxu0 0
    %692 = vmatpush1.bf16.msra.mxu0 %v525
    %693 = vmatprep.subr.bf16.mxu0 0
    %694 = vmatpush1.bf16.msra.mxu0 %v526
    %695 = vmatprep.subr.bf16.mxu0 0
    %696 = vmatpush1.bf16.msra.mxu0 %v527
    %697 = vmatprep.mubr.bf16.mxu0 %v100
    %698 = vmatmul.mubr.bf16.gmra.mrb[0].mxu0 %v99
    %v699 = vpop.f32.mrb[0].mxu0
    %v700 = vadd.f32 %v659, %v699
    %v701 = vpop.f32.mrb[0].mxu0
    %v702 = vpop.f32.mrb[0].mxu0
    %v703 = vadd.f32 %v662, %v702
    %v704 = vpop.f32.mrb[0].mxu0
    %705 = vdwg.mxu0
    %706 = vmatprep.subr.bf16.mxu0 0
    %707 = vmatpush1.bf16.msra.mxu0 %v528
    %708 = vmatprep.subr.bf16.mxu0 0
    %709 = vmatpush1.bf16.msra.mxu0 %v529
    %710 = vmatprep.subr.bf16.mxu0 0
    %711 = vmatpush1.bf16.msra.mxu0 %v530
    %712 = vmatprep.subr.bf16.mxu0 0
    %713 = vmatpush1.bf16.msra.mxu0 %v531
    %714 = vmatprep.subr.bf16.mxu0 0
    %715 = vmatpush1.bf16.msra.mxu0 %v532
    %716 = vmatprep.subr.bf16.mxu0 0
    %717 = vmatpush1.bf16.msra.mxu0 %v533
    %718 = vmatprep.subr.bf16.mxu0 0
    %719 = vmatpush1.bf16.msra.mxu0 %v534
    %720 = vmatprep.subr.bf16.mxu0 0
    %721 = vmatpush1.bf16.msra.mxu0 %v535
    %722 = vmatprep.subr.bf16.mxu0 0
    %723 = vmatpush1.bf16.msra.mxu0 %v536
    %724 = vmatprep.subr.bf16.mxu0 0
    %725 = vmatpush1.bf16.msra.mxu0 %v537
    %726 = vmatprep.subr.bf16.mxu0 0
    %727 = vmatpush1.bf16.msra.mxu0 %v538
    %728 = vmatprep.subr.bf16.mxu0 0
    %729 = vmatpush1.bf16.msra.mxu0 %v539
    %730 = vmatprep.subr.bf16.mxu0 0
    %731 = vmatpush1.bf16.msra.mxu0 %v540
    %732 = vmatprep.subr.bf16.mxu0 0
    %733 = vmatpush1.bf16.msra.mxu0 %v541
    %734 = vmatprep.subr.bf16.mxu0 0
    %735 = vmatpush1.bf16.msra.mxu0 %v542
    %736 = vmatprep.subr.bf16.mxu0 0
    %737 = vmatpush1.bf16.msra.mxu0 %v543
    %738 = vmatprep.mubr.bf16.mxu0 %v102
    %739 = vmatmul.mubr.bf16.gmra.mrb[0].mxu0 %v101
    %v740 = vpop.f32.mrb[0].mxu0
    %v741 = vadd.f32 %v700, %v740
    %v742 = vpop.f32.mrb[0].mxu0
    %v743 = vpop.f32.mrb[0].mxu0
    %v744 = vadd.f32 %v703, %v743
    %v745 = vpop.f32.mrb[0].mxu0
    %746 = vdwg.mxu0
    %747 = vmatprep.subr.bf16.mxu0 0
    %748 = vmatpush1.bf16.msra.mxu0 %v544
    %749 = vmatprep.subr.bf16.mxu0 0
    %750 = vmatpush1.bf16.msra.mxu0 %v545
    %751 = vmatprep.subr.bf16.mxu0 0
    %752 = vmatpush1.bf16.msra.mxu0 %v546
    %753 = vmatprep.subr.bf16.mxu0 0
    %754 = vmatpush1.bf16.msra.mxu0 %v547
    %755 = vmatprep.subr.bf16.mxu0 0
    %756 = vmatpush1.bf16.msra.mxu0 %v548
    %757 = vmatprep.subr.bf16.mxu0 0
    %758 = vmatpush1.bf16.msra.mxu0 %v549
    %759 = vmatprep.subr.bf16.mxu0 0
    %760 = vmatpush1.bf16.msra.mxu0 %v550
    %761 = vmatprep.subr.bf16.mxu0 0
    %762 = vmatpush1.bf16.msra.mxu0 %v551
    %763 = vmatprep.subr.bf16.mxu0 0
    %764 = vmatpush1.bf16.msra.mxu0 %v552
    %765 = vmatprep.subr.bf16.mxu0 0
    %766 = vmatpush1.bf16.msra.mxu0 %v553
    %767 = vmatprep.subr.bf16.mxu0 0
    %768 = vmatpush1.bf16.msra.mxu0 %v554
    %769 = vmatprep.subr.bf16.mxu0 0
    %770 = vmatpush1.bf16.msra.mxu0 %v555
    %771 = vmatprep.subr.bf16.mxu0 0
    %772 = vmatpush1.bf16.msra.mxu0 %v556
    %773 = vmatprep.subr.bf16.mxu0 0
    %774 = vmatpush1.bf16.msra.mxu0 %v557
    %775 = vmatprep.subr.bf16.mxu0 0
    %776 = vmatpush1.bf16.msra.mxu0 %v558
    %777 = vmatprep.subr.bf16.mxu0 0
    %778 = vmatpush1.bf16.msra.mxu0 %v559
    %779 = vmatprep.mubr.bf16.mxu0 %v104
    %780 = vmatmul.mubr.bf16.gmra.mrb[0].mxu0 %v103
    %v781 = vpop.f32.mrb[0].mxu0
    %v782 = vadd.f32 %v741, %v781
    %v783 = vpop.f32.mrb[0].mxu0
    %v784 = vpop.f32.mrb[0].mxu0
    %v785 = vadd.f32 %v744, %v784
    %v786 = vpop.f32.mrb[0].mxu0
    %787 = vdwg.mxu0
    %v788 = vmax.f32 %v782, 0.0
    %v789 = vmax.f32 %v785, 0.0
    %v790 = vpack.c.bf16 %v789, %v788
    %v791 = vld [vmem:[#allocation7] sm:$0xff]
    %v792 = vld [vmem:[#allocation7 + $0x8] sm:$0xff]
    %v793 = vld [vmem:[#allocation7 + $0x10] sm:$0xff]
    %v794 = vld [vmem:[#allocation7 + $0x18] sm:$0xff]
    %v795 = vld [vmem:[#allocation7 + $0x20] sm:$0xff]
    %v796 = vld [vmem:[#allocation7 + $0x28] sm:$0xff]
    %v797 = vld [vmem:[#allocation7 + $0x30] sm:$0xff]
    %v798 = vld [vmem:[#allocation7 + $0x38] sm:$0xff]
    %v799 = vld [vmem:[#allocation7 + $0x40] sm:$0xff]
    %v800 = vld [vmem:[#allocation7 + $0x48] sm:$0xff]
    %v801 = vld [vmem:[#allocation7 + $0x50] sm:$0xff]
    %v802 = vld [vmem:[#allocation7 + $0x58] sm:$0xff]
    %v803 = vld [vmem:[#allocation7 + $0x60] sm:$0xff]
    %v804 = vld [vmem:[#allocation7 + $0x68] sm:$0xff]
    %v805 = vld [vmem:[#allocation7 + $0x70] sm:$0xff]
    %v806 = vld [vmem:[#allocation7 + $0x78] sm:$0xff]
    %v807 = vld [vmem:[#allocation7 + $0x80] sm:$0xff]
    %v808 = vld [vmem:[#allocation7 + $0x88] sm:$0xff]
    %v809 = vld [vmem:[#allocation7 + $0x90] sm:$0xff]
    %v810 = vld [vmem:[#allocation7 + $0x98] sm:$0xff]
    %v811 = vld [vmem:[#allocation7 + $0xa0] sm:$0xff]
    %v812 = vld [vmem:[#allocation7 + $0xa8] sm:$0xff]
    %v813 = vld [vmem:[#allocation7 + $0xb0] sm:$0xff]
    %v814 = vld [vmem:[#allocation7 + $0xb8] sm:$0xff]
    %v815 = vld [vmem:[#allocation7 + $0xc0] sm:$0xff]
    %v816 = vld [vmem:[#allocation7 + $0xc8] sm:$0xff]
    %v817 = vld [vmem:[#allocation7 + $0xd0] sm:$0xff]
    %v818 = vld [vmem:[#allocation7 + $0xd8] sm:$0xff]
    %v819 = vld [vmem:[#allocation7 + $0xe0] sm:$0xff]
    %v820 = vld [vmem:[#allocation7 + $0xe8] sm:$0xff]
    %v821 = vld [vmem:[#allocation7 + $0xf0] sm:$0xff]
    %v822 = vld [vmem:[#allocation7 + $0xf8] sm:$0xff]
    %v823 = vld [vmem:[#allocation7 + $0x100] sm:$0xff]
    %v824 = vld [vmem:[#allocation7 + $0x108] sm:$0xff]
    %v825 = vld [vmem:[#allocation7 + $0x110] sm:$0xff]
    %v826 = vld [vmem:[#allocation7 + $0x118] sm:$0xff]
    %v827 = vld [vmem:[#allocation7 + $0x120] sm:$0xff]
    %v828 = vld [vmem:[#allocation7 + $0x128] sm:$0xff]
    %v829 = vld [vmem:[#allocation7 + $0x130] sm:$0xff]
    %v830 = vld [vmem:[#allocation7 + $0x138] sm:$0xff]
    %v831 = vld [vmem:[#allocation7 + $0x140] sm:$0xff]
    %v832 = vld [vmem:[#allocation7 + $0x148] sm:$0xff]
    %v833 = vld [vmem:[#allocation7 + $0x150] sm:$0xff]
    %v834 = vld [vmem:[#allocation7 + $0x158] sm:$0xff]
    %v835 = vld [vmem:[#allocation7 + $0x160] sm:$0xff]
    %v836 = vld [vmem:[#allocation7 + $0x168] sm:$0xff]
    %v837 = vld [vmem:[#allocation7 + $0x170] sm:$0xff]
    %v838 = vld [vmem:[#allocation7 + $0x178] sm:$0xff]
    %v839 = vld [vmem:[#allocation7 + $0x180] sm:$0xff]
    %v840 = vld [vmem:[#allocation7 + $0x188] sm:$0xff]
    %v841 = vld [vmem:[#allocation7 + $0x190] sm:$0xff]
    %v842 = vld [vmem:[#allocation7 + $0x198] sm:$0xff]
    %v843 = vld [vmem:[#allocation7 + $0x1a0] sm:$0xff]
    %v844 = vld [vmem:[#allocation7 + $0x1a8] sm:$0xff]
    %v845 = vld [vmem:[#allocation7 + $0x1b0] sm:$0xff]
    %v846 = vld [vmem:[#allocation7 + $0x1b8] sm:$0xff]
    %v847 = vld [vmem:[#allocation7 + $0x1c0] sm:$0xff]
    %v848 = vld [vmem:[#allocation7 + $0x1c8] sm:$0xff]
    %v849 = vld [vmem:[#allocation7 + $0x1d0] sm:$0xff]
    %v850 = vld [vmem:[#allocation7 + $0x1d8] sm:$0xff]
    %v851 = vld [vmem:[#allocation7 + $0x1e0] sm:$0xff]
    %v852 = vld [vmem:[#allocation7 + $0x1e8] sm:$0xff]
    %v853 = vld [vmem:[#allocation7 + $0x1f0] sm:$0xff]
    %v854 = vld [vmem:[#allocation7 + $0x1f8] sm:$0xff]
    %v919 = vunpack.c.l.b16 %v791
    %v920 = vunpack.c.h.b16 %v791
    %v921 = vunpack.c.l.b16 %v792
    %v922 = vunpack.c.h.b16 %v792
    %v923 = vunpack.c.l.b16 %v793
    %v924 = vunpack.c.h.b16 %v793
    %v925 = vunpack.c.l.b16 %v794
    %v926 = vunpack.c.h.b16 %v794
    %v927 = vunpack.c.l.b16 %v795
    %v928 = vunpack.c.h.b16 %v795
    %v929 = vunpack.c.l.b16 %v796
    %v930 = vunpack.c.h.b16 %v796
    %v931 = vunpack.c.l.b16 %v797
    %v932 = vunpack.c.h.b16 %v797
    %v933 = vunpack.c.l.b16 %v798
    %v934 = vunpack.c.h.b16 %v798
    %v935 = vunpack.c.l.b16 %v799
    %v936 = vunpack.c.h.b16 %v799
    %v937 = vunpack.c.l.b16 %v800
    %v938 = vunpack.c.h.b16 %v800
    %v939 = vunpack.c.l.b16 %v801
    %v940 = vunpack.c.h.b16 %v801
    %v941 = vunpack.c.l.b16 %v802
    %v942 = vunpack.c.h.b16 %v802
    %v943 = vunpack.c.l.b16 %v803
    %v944 = vunpack.c.h.b16 %v803
    %v945 = vunpack.c.l.b16 %v804
    %v946 = vunpack.c.h.b16 %v804
    %v947 = vunpack.c.l.b16 %v805
    %v948 = vunpack.c.h.b16 %v805
    %v949 = vunpack.c.l.b16 %v806
    %v950 = vunpack.c.h.b16 %v806
    %v951 = vunpack.c.l.b16 %v807
    %v952 = vunpack.c.h.b16 %v807
    %v953 = vunpack.c.l.b16 %v808
    %v954 = vunpack.c.h.b16 %v808
    %v955 = vunpack.c.l.b16 %v809
    %v956 = vunpack.c.h.b16 %v809
    %v957 = vunpack.c.l.b16 %v810
    %v958 = vunpack.c.h.b16 %v810
    %v959 = vunpack.c.l.b16 %v811
    %v960 = vunpack.c.h.b16 %v811
    %v961 = vunpack.c.l.b16 %v812
    %v962 = vunpack.c.h.b16 %v812
    %v963 = vunpack.c.l.b16 %v813
    %v964 = vunpack.c.h.b16 %v813
    %v965 = vunpack.c.l.b16 %v814
    %v966 = vunpack.c.h.b16 %v814
    %v967 = vunpack.c.l.b16 %v815
    %v968 = vunpack.c.h.b16 %v815
    %v969 = vunpack.c.l.b16 %v816
    %v970 = vunpack.c.h.b16 %v816
    %v971 = vunpack.c.l.b16 %v817
    %v972 = vunpack.c.h.b16 %v817
    %v973 = vunpack.c.l.b16 %v818
    %v974 = vunpack.c.h.b16 %v818
    %v975 = vunpack.c.l.b16 %v819
    %v976 = vunpack.c.h.b16 %v819
    %v977 = vunpack.c.l.b16 %v820
    %v978 = vunpack.c.h.b16 %v820
    %v979 = vunpack.c.l.b16 %v821
    %v980 = vunpack.c.h.b16 %v821
    %v981 = vunpack.c.l.b16 %v822
    %v982 = vunpack.c.h.b16 %v822
    %v983 = vunpack.c.l.b16 %v823
    %v984 = vunpack.c.h.b16 %v823
    %v985 = vunpack.c.l.b16 %v824
    %v986 = vunpack.c.h.b16 %v824
    %v987 = vunpack.c.l.b16 %v825
    %v988 = vunpack.c.h.b16 %v825
    %v989 = vunpack.c.l.b16 %v826
    %v990 = vunpack.c.h.b16 %v826
    %v991 = vunpack.c.l.b16 %v827
    %v992 = vunpack.c.h.b16 %v827
    %v993 = vunpack.c.l.b16 %v828
    %v994 = vunpack.c.h.b16 %v828
    %v995 = vunpack.c.l.b16 %v829
    %v996 = vunpack.c.h.b16 %v829
    %v997 = vunpack.c.l.b16 %v830
    %v998 = vunpack.c.h.b16 %v830
    %v999 = vunpack.c.l.b16 %v831
    %v1000 = vunpack.c.h.b16 %v831
    %v1001 = vunpack.c.l.b16 %v832
    %v1002 = vunpack.c.h.b16 %v832
    %v1003 = vunpack.c.l.b16 %v833
    %v1004 = vunpack.c.h.b16 %v833
    %v1005 = vunpack.c.l.b16 %v834
    %v1006 = vunpack.c.h.b16 %v834
    %v1007 = vunpack.c.l.b16 %v835
    %v1008 = vunpack.c.h.b16 %v835
    %v1009 = vunpack.c.l.b16 %v836
    %v1010 = vunpack.c.h.b16 %v836
    %v1011 = vunpack.c.l.b16 %v837
    %v1012 = vunpack.c.h.b16 %v837
    %v1013 = vunpack.c.l.b16 %v838
    %v1014 = vunpack.c.h.b16 %v838
    %v1015 = vunpack.c.l.b16 %v839
    %v1016 = vunpack.c.h.b16 %v839
    %v1017 = vunpack.c.l.b16 %v840
    %v1018 = vunpack.c.h.b16 %v840
    %v1019 = vunpack.c.l.b16 %v841
    %v1020 = vunpack.c.h.b16 %v841
    %v1021 = vunpack.c.l.b16 %v842
    %v1022 = vunpack.c.h.b16 %v842
    %v1023 = vunpack.c.l.b16 %v843
    %v1024 = vunpack.c.h.b16 %v843
    %v1025 = vunpack.c.l.b16 %v844
    %v1026 = vunpack.c.h.b16 %v844
    %v1027 = vunpack.c.l.b16 %v845
    %v1028 = vunpack.c.h.b16 %v845
    %v1029 = vunpack.c.l.b16 %v846
    %v1030 = vunpack.c.h.b16 %v846
    %v1031 = vunpack.c.l.b16 %v847
    %v1032 = vunpack.c.h.b16 %v847
    %v1033 = vunpack.c.l.b16 %v848
    %v1034 = vunpack.c.h.b16 %v848
    %v1035 = vunpack.c.l.b16 %v849
    %v1036 = vunpack.c.h.b16 %v849
    %v1037 = vunpack.c.l.b16 %v850
    %v1038 = vunpack.c.h.b16 %v850
    %v1039 = vunpack.c.l.b16 %v851
    %v1040 = vunpack.c.h.b16 %v851
    %v1041 = vunpack.c.l.b16 %v852
    %v1042 = vunpack.c.h.b16 %v852
    %v1043 = vunpack.c.l.b16 %v853
    %v1044 = vunpack.c.h.b16 %v853
    %v1045 = vunpack.c.l.b16 %v854
    %v1046 = vunpack.c.h.b16 %v854
    %v1047 = vpack.c.b16 %v927, %v919
    %v1048 = vpack.c.b16 %v928, %v920
    %v1049 = vpack.c.b16 %v929, %v921
    %v1050 = vpack.c.b16 %v930, %v922
    %v1051 = vpack.c.b16 %v931, %v923
    %v1052 = vpack.c.b16 %v932, %v924
    %v1053 = vpack.c.b16 %v933, %v925
    %v1054 = vpack.c.b16 %v934, %v926
    %v1055 = vpack.c.b16 %v943, %v935
    %v1056 = vpack.c.b16 %v944, %v936
    %v1057 = vpack.c.b16 %v945, %v937
    %v1058 = vpack.c.b16 %v946, %v938
    %v1059 = vpack.c.b16 %v947, %v939
    %v1060 = vpack.c.b16 %v948, %v940
    %v1061 = vpack.c.b16 %v949, %v941
    %v1062 = vpack.c.b16 %v950, %v942
    %v1063 = vpack.c.b16 %v959, %v951
    %v1064 = vpack.c.b16 %v960, %v952
    %v1065 = vpack.c.b16 %v961, %v953
    %v1066 = vpack.c.b16 %v962, %v954
    %v1067 = vpack.c.b16 %v963, %v955
    %v1068 = vpack.c.b16 %v964, %v956
    %v1069 = vpack.c.b16 %v965, %v957
    %v1070 = vpack.c.b16 %v966, %v958
    %v1071 = vpack.c.b16 %v975, %v967
    %v1072 = vpack.c.b16 %v976, %v968
    %v1073 = vpack.c.b16 %v977, %v969
    %v1074 = vpack.c.b16 %v978, %v970
    %v1075 = vpack.c.b16 %v979, %v971
    %v1076 = vpack.c.b16 %v980, %v972
    %v1077 = vpack.c.b16 %v981, %v973
    %v1078 = vpack.c.b16 %v982, %v974
    %v1079 = vpack.c.b16 %v991, %v983
    %v1080 = vpack.c.b16 %v992, %v984
    %v1081 = vpack.c.b16 %v993, %v985
    %v1082 = vpack.c.b16 %v994, %v986
    %v1083 = vpack.c.b16 %v995, %v987
    %v1084 = vpack.c.b16 %v996, %v988
    %v1085 = vpack.c.b16 %v997, %v989
    %v1086 = vpack.c.b16 %v998, %v990
    %v1087 = vpack.c.b16 %v1007, %v999
    %v1088 = vpack.c.b16 %v1008, %v1000
    %v1089 = vpack.c.b16 %v1009, %v1001
    %v1090 = vpack.c.b16 %v1010, %v1002
    %v1091 = vpack.c.b16 %v1011, %v1003
    %v1092 = vpack.c.b16 %v1012, %v1004
    %v1093 = vpack.c.b16 %v1013, %v1005
    %v1094 = vpack.c.b16 %v1014, %v1006
    %v1095 = vpack.c.b16 %v1023, %v1015
    %v1096 = vpack.c.b16 %v1024, %v1016
    %v1097 = vpack.c.b16 %v1025, %v1017
    %v1098 = vpack.c.b16 %v1026, %v1018
    %v1099 = vpack.c.b16 %v1027, %v1019
    %v1100 = vpack.c.b16 %v1028, %v1020
    %v1101 = vpack.c.b16 %v1029, %v1021
    %v1102 = vpack.c.b16 %v1030, %v1022
    %v1103 = vpack.c.b16 %v1039, %v1031
    %v1104 = vpack.c.b16 %v1040, %v1032
    %v1105 = vpack.c.b16 %v1041, %v1033
    %v1106 = vpack.c.b16 %v1042, %v1034
    %v1107 = vpack.c.b16 %v1043, %v1035
    %v1108 = vpack.c.b16 %v1044, %v1036
    %v1109 = vpack.c.b16 %v1045, %v1037
    %v1110 = vpack.c.b16 %v1046, %v1038
    %1175 = vmatprep.subr.bf16.mxu0 %v1048
    %1176 = vmatpush1.bf16.msra.mxu0 %v1047
    %1177 = vmatprep.subr.bf16.mxu0 %v1056
    %1178 = vmatpush1.bf16.msra.mxu0 %v1055
    %1179 = vmatprep.subr.bf16.mxu0 %v1064
    %1180 = vmatpush1.bf16.msra.mxu0 %v1063
    %1181 = vmatprep.subr.bf16.mxu0 %v1072
    %1182 = vmatpush1.bf16.msra.mxu0 %v1071
    %1183 = vmatprep.subr.bf16.mxu0 %v1080
    %1184 = vmatpush1.bf16.msra.mxu0 %v1079
    %1185 = vmatprep.subr.bf16.mxu0 %v1088
    %1186 = vmatpush1.bf16.msra.mxu0 %v1087
    %1187 = vmatprep.subr.bf16.mxu0 %v1096
    %1188 = vmatpush1.bf16.msra.mxu0 %v1095
    %1189 = vmatprep.subr.bf16.mxu0 %v1104
    %1190 = vmatpush1.bf16.msra.mxu0 %v1103
    %1191 = vmatprep.subr.bf16.mxu0 0
    %1192 = vmatpush1.bf16.msra.mxu0 0
    %1193 = vmatprep.subr.bf16.mxu0 0
    %1194 = vmatpush1.bf16.msra.mxu0 0
    %1195 = vmatprep.subr.bf16.mxu0 0
    %1196 = vmatpush1.bf16.msra.mxu0 0
    %1197 = vmatprep.subr.bf16.mxu0 0
    %1198 = vmatpush1.bf16.msra.mxu0 0
    %1199 = vmatprep.subr.bf16.mxu0 0
    %1200 = vmatpush1.bf16.msra.mxu0 0
    %1201 = vmatprep.subr.bf16.mxu0 0
    %1202 = vmatpush1.bf16.msra.mxu0 0
    %1203 = vmatprep.subr.bf16.mxu0 0
    %1204 = vmatpush1.bf16.msra.mxu0 0
    %1205 = vmatprep.subr.bf16.mxu0 0
    %1206 = vmatpush1.bf16.msra.mxu0 0
    %1207 = vmatprep.mubr.bf16.mxu0 0
    %1208 = vmatmul.mubr.bf16.gmra.mrb[0].mxu0 %v790
    %v1209 = vpop.f32.mrb[0].mxu0
    %v1210 = vadd.f32 0.0, %v1209
    %v1211 = vpop.f32.mrb[0].mxu0
    %v1212 = vadd.f32 0.0, %v1211
    %v1213 = vpop.f32.mrb[0].mxu0
    %v1214 = vadd.f32 0.0, %v1213
    %v1215 = vpop.f32.mrb[0].mxu0
    %v1216 = vadd.f32 0.0, %v1215
    %1217 = vdwg.mxu0
    %1218 = vmatprep.subr.bf16.mxu0 %v1050
    %1219 = vmatpush1.bf16.msra.mxu0 %v1049
    %1220 = vmatprep.subr.bf16.mxu0 %v1058
    %1221 = vmatpush1.bf16.msra.mxu0 %v1057
    %1222 = vmatprep.subr.bf16.mxu0 %v1066
    %1223 = vmatpush1.bf16.msra.mxu0 %v1065
    %1224 = vmatprep.subr.bf16.mxu0 %v1074
    %1225 = vmatpush1.bf16.msra.mxu0 %v1073
    %1226 = vmatprep.subr.bf16.mxu0 %v1082
    %1227 = vmatpush1.bf16.msra.mxu0 %v1081
    %1228 = vmatprep.subr.bf16.mxu0 %v1090
    %1229 = vmatpush1.bf16.msra.mxu0 %v1089
    %1230 = vmatprep.subr.bf16.mxu0 %v1098
    %1231 = vmatpush1.bf16.msra.mxu0 %v1097
    %1232 = vmatprep.subr.bf16.mxu0 %v1106
    %1233 = vmatpush1.bf16.msra.mxu0 %v1105
    %1234 = vmatprep.subr.bf16.mxu0 0
    %1235 = vmatpush1.bf16.msra.mxu0 0
    %1236 = vmatprep.subr.bf16.mxu0 0
    %1237 = vmatpush1.bf16.msra.mxu0 0
    %1238 = vmatprep.subr.bf16.mxu0 0
    %1239 = vmatpush1.bf16.msra.mxu0 0
    %1240 = vmatprep.subr.bf16.mxu0 0
    %1241 = vmatpush1.bf16.msra.mxu0 0
    %1242 = vmatprep.subr.bf16.mxu0 0
    %1243 = vmatpush1.bf16.msra.mxu0 0
    %1244 = vmatprep.subr.bf16.mxu0 0
    %1245 = vmatpush1.bf16.msra.mxu0 0
    %1246 = vmatprep.subr.bf16.mxu0 0
    %1247 = vmatpush1.bf16.msra.mxu0 0
    %1248 = vmatprep.subr.bf16.mxu0 0
    %1249 = vmatpush1.bf16.msra.mxu0 0
    %1250 = vmatprep.mubr.bf16.mxu0 0
    %1251 = vmatmul.mubr.bf16.gmra.mrb[0].mxu0 %v790
    %v1252 = vpop.f32.mrb[0].mxu0
    %v1253 = vadd.f32 0.0, %v1252
    %v1254 = vpop.f32.mrb[0].mxu0
    %v1255 = vadd.f32 0.0, %v1254
    %v1256 = vpop.f32.mrb[0].mxu0
    %v1257 = vadd.f32 0.0, %v1256
    %v1258 = vpop.f32.mrb[0].mxu0
    %v1259 = vadd.f32 0.0, %v1258
    %1260 = vdwg.mxu0
    %1261 = vmatprep.subr.bf16.mxu0 %v1052
    %1262 = vmatpush1.bf16.msra.mxu0 %v1051
    %1263 = vmatprep.subr.bf16.mxu0 %v1060
    %1264 = vmatpush1.bf16.msra.mxu0 %v1059
    %1265 = vmatprep.subr.bf16.mxu0 %v1068
    %1266 = vmatpush1.bf16.msra.mxu0 %v1067
    %1267 = vmatprep.subr.bf16.mxu0 %v1076
    %1268 = vmatpush1.bf16.msra.mxu0 %v1075
    %1269 = vmatprep.subr.bf16.mxu0 %v1084
    %1270 = vmatpush1.bf16.msra.mxu0 %v1083
    %1271 = vmatprep.subr.bf16.mxu0 %v1092
    %1272 = vmatpush1.bf16.msra.mxu0 %v1091
    %1273 = vmatprep.subr.bf16.mxu0 %v1100
    %1274 = vmatpush1.bf16.msra.mxu0 %v1099
    %1275 = vmatprep.subr.bf16.mxu0 %v1108
    %1276 = vmatpush1.bf16.msra.mxu0 %v1107
    %1277 = vmatprep.subr.bf16.mxu0 0
    %1278 = vmatpush1.bf16.msra.mxu0 0
    %1279 = vmatprep.subr.bf16.mxu0 0
    %1280 = vmatpush1.bf16.msra.mxu0 0
    %1281 = vmatprep.subr.bf16.mxu0 0
    %1282 = vmatpush1.bf16.msra.mxu0 0
    %1283 = vmatprep.subr.bf16.mxu0 0
    %1284 = vmatpush1.bf16.msra.mxu0 0
    %1285 = vmatprep.subr.bf16.mxu0 0
    %1286 = vmatpush1.bf16.msra.mxu0 0
    %1287 = vmatprep.subr.bf16.mxu0 0
    %1288 = vmatpush1.bf16.msra.mxu0 0
    %1289 = vmatprep.subr.bf16.mxu0 0
    %1290 = vmatpush1.bf16.msra.mxu0 0
    %1291 = vmatprep.subr.bf16.mxu0 0
    %1292 = vmatpush1.bf16.msra.mxu0 0
    %1293 = vmatprep.mubr.bf16.mxu0 0
    %1294 = vmatmul.mubr.bf16.gmra.mrb[0].mxu0 %v790
    %v1295 = vpop.f32.mrb[0].mxu0
    %v1296 = vadd.f32 0.0, %v1295
    %v1297 = vpop.f32.mrb[0].mxu0
    %v1298 = vadd.f32 0.0, %v1297
    %v1299 = vpop.f32.mrb[0].mxu0
    %v1300 = vadd.f32 0.0, %v1299
    %v1301 = vpop.f32.mrb[0].mxu0
    %v1302 = vadd.f32 0.0, %v1301
    %1303 = vdwg.mxu0
    %1304 = vmatprep.subr.bf16.mxu0 %v1054
    %1305 = vmatpush1.bf16.msra.mxu0 %v1053
    %1306 = vmatprep.subr.bf16.mxu0 %v1062
    %1307 = vmatpush1.bf16.msra.mxu0 %v1061
    %1308 = vmatprep.subr.bf16.mxu0 %v1070
    %1309 = vmatpush1.bf16.msra.mxu0 %v1069
    %1310 = vmatprep.subr.bf16.mxu0 %v1078
    %1311 = vmatpush1.bf16.msra.mxu0 %v1077
    %1312 = vmatprep.subr.bf16.mxu0 %v1086
    %1313 = vmatpush1.bf16.msra.mxu0 %v1085
    %1314 = vmatprep.subr.bf16.mxu0 %v1094
    %1315 = vmatpush1.bf16.msra.mxu0 %v1093
    %1316 = vmatprep.subr.bf16.mxu0 %v1102
    %1317 = vmatpush1.bf16.msra.mxu0 %v1101
    %1318 = vmatprep.subr.bf16.mxu0 %v1110
    %1319 = vmatpush1.bf16.msra.mxu0 %v1109
    %1320 = vmatprep.subr.bf16.mxu0 0
    %1321 = vmatpush1.bf16.msra.mxu0 0
    %1322 = vmatprep.subr.bf16.mxu0 0
    %1323 = vmatpush1.bf16.msra.mxu0 0
    %1324 = vmatprep.subr.bf16.mxu0 0
    %1325 = vmatpush1.bf16.msra.mxu0 0
    %1326 = vmatprep.subr.bf16.mxu0 0
    %1327 = vmatpush1.bf16.msra.mxu0 0
    %1328 = vmatprep.subr.bf16.mxu0 0
    %1329 = vmatpush1.bf16.msra.mxu0 0
    %1330 = vmatprep.subr.bf16.mxu0 0
    %1331 = vmatpush1.bf16.msra.mxu0 0
    %1332 = vmatprep.subr.bf16.mxu0 0
    %1333 = vmatpush1.bf16.msra.mxu0 0
    %1334 = vmatprep.subr.bf16.mxu0 0
    %1335 = vmatpush1.bf16.msra.mxu0 0
    %1336 = vmatprep.mubr.bf16.mxu0 0
    %1337 = vmatmul.mubr.bf16.gmra.mrb[0].mxu0 %v790
    %v1338 = vpop.f32.mrb[0].mxu0
    %v1339 = vadd.f32 0.0, %v1338
    %v1340 = vpop.f32.mrb[0].mxu0
    %v1341 = vadd.f32 0.0, %v1340
    %v1342 = vpop.f32.mrb[0].mxu0
    %v1343 = vadd.f32 0.0, %v1342
    %v1344 = vpop.f32.mrb[0].mxu0
    %v1345 = vadd.f32 0.0, %v1344
    %1346 = vdwg.mxu0
    %v1347 = vadd.f32 %v81, %v1210
    %v1348 = vadd.f32 %v82, %v1212
    %v1349 = vadd.f32 %v83, %v1253
    %v1350 = vadd.f32 %v84, %v1255
    %v1351 = vadd.f32 %v85, %v1296
    %v1352 = vadd.f32 %v86, %v1298
    %v1353 = vadd.f32 %v87, %v1339
    %v1354 = vadd.f32 %v88, %v1341
    %v1355 = vadd.f32 %v89, %v1214
    %v1356 = vadd.f32 %v90, %v1216
    %v1357 = vadd.f32 %v91, %v1257
    %v1358 = vadd.f32 %v92, %v1259
    %v1359 = vadd.f32 %v93, %v1300
    %v1360 = vadd.f32 %v94, %v1302
    %v1361 = vadd.f32 %v95, %v1343
    %v1362 = vadd.f32 %v96, %v1345
    %v1363 = vld [vmem:[%s4] sm:$0xff]
    %v1365 = vlaneseq
    %v1366 = vshrl.u32 %v1365, 7
    %v1367 = vsub.s32 0, %v1366
    %v1368 = vrot.slane %v1363, %v1367
    %v1369 = vlaneseq
    %v1370 = vshrl.u32 %v1369, 7
    %v1371 = vsub.s32 1, %v1370
    %v1372 = vrot.slane %v1363, %v1371
    %v1373 = vlaneseq
    %v1374 = vshrl.u32 %v1373, 7
    %v1375 = vsub.s32 2, %v1374
    %v1376 = vrot.slane %v1363, %v1375
    %v1377 = vlaneseq
    %v1378 = vshrl.u32 %v1377, 7
    %v1379 = vsub.s32 3, %v1378
    %v1380 = vrot.slane %v1363, %v1379
    %v1381 = vlaneseq
    %v1382 = vshrl.u32 %v1381, 7
    %v1383 = vsub.s32 4, %v1382
    %v1384 = vrot.slane %v1363, %v1383
    %v1385 = vlaneseq
    %v1386 = vshrl.u32 %v1385, 7
    %v1387 = vsub.s32 5, %v1386
    %v1388 = vrot.slane %v1363, %v1387
    %v1389 = vlaneseq
    %v1390 = vshrl.u32 %v1389, 7
    %v1391 = vsub.s32 6, %v1390
    %v1392 = vrot.slane %v1363, %v1391
    %v1393 = vlaneseq
    %v1394 = vshrl.u32 %v1393, 7
    %v1395 = vsub.s32 7, %v1394
    %v1396 = vrot.slane %v1363, %v1395
    %v1405 = vadd.f32 %v1347, %v1368
    %v1406 = vadd.f32 %v1348, %v1372
    %v1407 = vadd.f32 %v1349, %v1376
    %v1408 = vadd.f32 %v1350, %v1380
    %v1409 = vadd.f32 %v1351, %v1384
    %v1410 = vadd.f32 %v1352, %v1388
    %v1411 = vadd.f32 %v1353, %v1392
    %v1412 = vadd.f32 %v1354, %v1396
    %v1413 = vadd.f32 %v1355, %v1368
    %v1414 = vadd.f32 %v1356, %v1372
    %v1415 = vadd.f32 %v1357, %v1376
    %v1416 = vadd.f32 %v1358, %v1380
    %v1417 = vadd.f32 %v1359, %v1384
    %v1418 = vadd.f32 %v1360, %v1388
    %v1419 = vadd.f32 %v1361, %v1392
    %v1420 = vadd.f32 %v1362, %v1396
    %v1421 = vadd.f32 %v1405, %v1406
    %v1422 = vadd.f32 %v1421, %v1407
    %v1423 = vadd.f32 %v1422, %v1408
    %v1424 = vadd.f32 %v1423, %v1409
    %v1425 = vadd.f32 %v1424, %v1410
    %v1426 = vadd.f32 %v1425, %v1411
    %v1427 = vadd.f32 %v1426, %v1412
    %1428 = vadd.xlane.f32.xlu0 %v1427
    %v1429 = vpop.xlane.xlu0 %1428
    %v1430 = vadd.f32 %v1413, %v1414
    %v1431 = vadd.f32 %v1430, %v1415
    %v1432 = vadd.f32 %v1431, %v1416
    %v1433 = vadd.f32 %v1432, %v1417
    %v1434 = vadd.f32 %v1433, %v1418
    %v1435 = vadd.f32 %v1434, %v1419
    %v1436 = vadd.f32 %v1435, %v1420
    %1437 = vadd.xlane.f32.xlu0 %v1436
    %v1438 = vpop.xlane.xlu0 %1437
    %v1439 = vrcp.pop 1024.0
    %v1440 = vmul.f32 %v1429, %v1439
    %v1441 = vmul.f32 %v1438, %v1439
    %v1442 = vsub.f32 %v1405, %v1440
    %v1443 = vsub.f32 %v1406, %v1440
    %v1444 = vsub.f32 %v1407, %v1440
    %v1445 = vsub.f32 %v1408, %v1440
    %v1446 = vsub.f32 %v1409, %v1440
    %v1447 = vsub.f32 %v1410, %v1440
    %v1448 = vsub.f32 %v1411, %v1440
    %v1449 = vsub.f32 %v1412, %v1440
    %v1450 = vsub.f32 %v1413, %v1441
    %v1451 = vsub.f32 %v1414, %v1441
    %v1452 = vsub.f32 %v1415, %v1441
    %v1453 = vsub.f32 %v1416, %v1441
    %v1454 = vsub.f32 %v1417, %v1441
    %v1455 = vsub.f32 %v1418, %v1441
    %v1456 = vsub.f32 %v1419, %v1441
    %v1457 = vsub.f32 %v1420, %v1441
    %v1458 = vmul.f32 %v1442, %v1442
    %v1459 = vmul.f32 %v1443, %v1443
    %v1460 = vmul.f32 %v1444, %v1444
    %v1461 = vmul.f32 %v1445, %v1445
    %v1462 = vmul.f32 %v1446, %v1446
    %v1463 = vmul.f32 %v1447, %v1447
    %v1464 = vmul.f32 %v1448, %v1448
    %v1465 = vmul.f32 %v1449, %v1449
    %v1466 = vmul.f32 %v1450, %v1450
    %v1467 = vmul.f32 %v1451, %v1451
    %v1468 = vmul.f32 %v1452, %v1452
    %v1469 = vmul.f32 %v1453, %v1453
    %v1470 = vmul.f32 %v1454, %v1454
    %v1471 = vmul.f32 %v1455, %v1455
    %v1472 = vmul.f32 %v1456, %v1456
    %v1473 = vmul.f32 %v1457, %v1457
    %v1474 = vadd.f32 %v1458, %v1459
    %v1475 = vadd.f32 %v1474, %v1460
    %v1476 = vadd.f32 %v1475, %v1461
    %v1477 = vadd.f32 %v1476, %v1462
    %v1478 = vadd.f32 %v1477, %v1463
    %v1479 = vadd.f32 %v1478, %v1464
    %v1480 = vadd.f32 %v1479, %v1465
    %1481 = vadd.xlane.f32.xlu0 %v1480
    %v1482 = vpop.xlane.xlu0 %1481
    %v1483 = vadd.f32 %v1466, %v1467
    %v1484 = vadd.f32 %v1483, %v1468
    %v1485 = vadd.f32 %v1484, %v1469
    %v1486 = vadd.f32 %v1485, %v1470
    %v1487 = vadd.f32 %v1486, %v1471
    %v1488 = vadd.f32 %v1487, %v1472
    %v1489 = vadd.f32 %v1488, %v1473
    %1490 = vadd.xlane.f32.xlu0 %v1489
    %v1491 = vpop.xlane.xlu0 %1490
    %v1492 = vmul.f32 %v1482, %v1439
    %v1493 = vmul.f32 %v1491, %v1439
    %v1494 = vadd.f32 %v1492, 1e-05
    %v1495 = vadd.f32 %v1493, 1e-05
    %v1496 = vrsqrt.pop %v1494
    %v1497 = vrsqrt.pop %v1495
    %v1498 = vld [vmem:[%s5] sm:$0xff]
    %v1500 = vlaneseq
    %v1501 = vshrl.u32 %v1500, 7
    %v1502 = vsub.s32 0, %v1501
    %v1503 = vrot.slane %v1498, %v1502
    %v1504 = vlaneseq
    %v1505 = vshrl.u32 %v1504, 7
    %v1506 = vsub.s32 1, %v1505
    %v1507 = vrot.slane %v1498, %v1506
    %v1508 = vlaneseq
    %v1509 = vshrl.u32 %v1508, 7
    %v1510 = vsub.s32 2, %v1509
    %v1511 = vrot.slane %v1498, %v1510
    %v1512 = vlaneseq
    %v1513 = vshrl.u32 %v1512, 7
    %v1514 = vsub.s32 3, %v1513
    %v1515 = vrot.slane %v1498, %v1514
    %v1516 = vlaneseq
    %v1517 = vshrl.u32 %v1516, 7
    %v1518 = vsub.s32 4, %v1517
    %v1519 = vrot.slane %v1498, %v1518
    %v1520 = vlaneseq
    %v1521 = vshrl.u32 %v1520, 7
    %v1522 = vsub.s32 5, %v1521
    %v1523 = vrot.slane %v1498, %v1522
    %v1524 = vlaneseq
    %v1525 = vshrl.u32 %v1524, 7
    %v1526 = vsub.s32 6, %v1525
    %v1527 = vrot.slane %v1498, %v1526
    %v1528 = vlaneseq
    %v1529 = vshrl.u32 %v1528, 7
    %v1530 = vsub.s32 7, %v1529
    %v1531 = vrot.slane %v1498, %v1530
    %v1540 = vmul.f32 %v1496, %v1503
    %v1541 = vmul.f32 %v1496, %v1507
    %v1542 = vmul.f32 %v1496, %v1511
    %v1543 = vmul.f32 %v1496, %v1515
    %v1544 = vmul.f32 %v1496, %v1519
    %v1545 = vmul.f32 %v1496, %v1523
    %v1546 = vmul.f32 %v1496, %v1527
    %v1547 = vmul.f32 %v1496, %v1531
    %v1548 = vmul.f32 %v1497, %v1503
    %v1549 = vmul.f32 %v1497, %v1507
    %v1550 = vmul.f32 %v1497, %v1511
    %v1551 = vmul.f32 %v1497, %v1515
    %v1552 = vmul.f32 %v1497, %v1519
    %v1553 = vmul.f32 %v1497, %v1523
    %v1554 = vmul.f32 %v1497, %v1527
    %v1555 = vmul.f32 %v1497, %v1531
    %v1556 = vmul.f32 %v1442, %v1540
    %v1557 = vmul.f32 %v1443, %v1541
    %v1558 = vmul.f32 %v1444, %v1542
    %v1559 = vmul.f32 %v1445, %v1543
    %v1560 = vmul.f32 %v1446, %v1544
    %v1561 = vmul.f32 %v1447, %v1545
    %v1562 = vmul.f32 %v1448, %v1546
    %v1563 = vmul.f32 %v1449, %v1547
    %v1564 = vmul.f32 %v1450, %v1548
    %v1565 = vmul.f32 %v1451, %v1549
    %v1566 = vmul.f32 %v1452, %v1550
    %v1567 = vmul.f32 %v1453, %v1551
    %v1568 = vmul.f32 %v1454, %v1552
    %v1569 = vmul.f32 %v1455, %v1553
    %v1570 = vmul.f32 %v1456, %v1554
    %v1571 = vmul.f32 %v1457, %v1555
    %v1572 = vld [vmem:[#allocation8] sm:$0xff]
    %v1574 = vlaneseq
    %v1575 = vshrl.u32 %v1574, 7
    %v1576 = vsub.s32 0, %v1575
    %v1577 = vrot.slane %v1572, %v1576
    %v1578 = vlaneseq
    %v1579 = vshrl.u32 %v1578, 7
    %v1580 = vsub.s32 1, %v1579
    %v1581 = vrot.slane %v1572, %v1580
    %v1582 = vlaneseq
    %v1583 = vshrl.u32 %v1582, 7
    %v1584 = vsub.s32 2, %v1583
    %v1585 = vrot.slane %v1572, %v1584
    %v1586 = vlaneseq
    %v1587 = vshrl.u32 %v1586, 7
    %v1588 = vsub.s32 3, %v1587
    %v1589 = vrot.slane %v1572, %v1588
    %v1590 = vlaneseq
    %v1591 = vshrl.u32 %v1590, 7
    %v1592 = vsub.s32 4, %v1591
    %v1593 = vrot.slane %v1572, %v1592
    %v1594 = vlaneseq
    %v1595 = vshrl.u32 %v1594, 7
    %v1596 = vsub.s32 5, %v1595
    %v1597 = vrot.slane %v1572, %v1596
    %v1598 = vlaneseq
    %v1599 = vshrl.u32 %v1598, 7
    %v1600 = vsub.s32 6, %v1599
    %v1601 = vrot.slane %v1572, %v1600
    %v1602 = vlaneseq
    %v1603 = vshrl.u32 %v1602, 7
    %v1604 = vsub.s32 7, %v1603
    %v1605 = vrot.slane %v1572, %v1604
    %v1614 = vadd.f32 %v1556, %v1577
    %v1615 = vadd.f32 %v1557, %v1581
    %v1616 = vadd.f32 %v1558, %v1585
    %v1617 = vadd.f32 %v1559, %v1589
    %v1618 = vadd.f32 %v1560, %v1593
    %v1619 = vadd.f32 %v1561, %v1597
    %v1620 = vadd.f32 %v1562, %v1601
    %v1621 = vadd.f32 %v1563, %v1605
    %v1622 = vadd.f32 %v1564, %v1577
    %v1623 = vadd.f32 %v1565, %v1581
    %v1624 = vadd.f32 %v1566, %v1585
    %v1625 = vadd.f32 %v1567, %v1589
    %v1626 = vadd.f32 %v1568, %v1593
    %v1627 = vadd.f32 %v1569, %v1597
    %v1628 = vadd.f32 %v1570, %v1601
    %v1629 = vadd.f32 %v1571, %v1605
    %1630 = vst [vmem:[#allocation10] sm:$0xff] %v1614
    %1631 = vst [vmem:[#allocation10 + $0x8] sm:$0xff] %v1615
    %1632 = vst [vmem:[#allocation10 + $0x10] sm:$0xff] %v1616
    %1633 = vst [vmem:[#allocation10 + $0x18] sm:$0xff] %v1617
    %1634 = vst [vmem:[#allocation10 + $0x20] sm:$0xff] %v1618
    %1635 = vst [vmem:[#allocation10 + $0x28] sm:$0xff] %v1619
    %1636 = vst [vmem:[#allocation10 + $0x30] sm:$0xff] %v1620
    %1637 = vst [vmem:[#allocation10 + $0x38] sm:$0xff] %v1621
    %1638 = vst [vmem:[#allocation10 + $0x40] sm:$0xff] %v1622
    %1639 = vst [vmem:[#allocation10 + $0x48] sm:$0xff] %v1623
    %1640 = vst [vmem:[#allocation10 + $0x50] sm:$0xff] %v1624
    %1641 = vst [vmem:[#allocation10 + $0x58] sm:$0xff] %v1625
    %1642 = vst [vmem:[#allocation10 + $0x60] sm:$0xff] %v1626
    %1643 = vst [vmem:[#allocation10 + $0x68] sm:$0xff] %v1627
    %1644 = vst [vmem:[#allocation10 + $0x70] sm:$0xff] %v1628
    %1645 = vst [vmem:[#allocation10 + $0x78] sm:$0xff] %v1629
    // Predicated region
    $region46: #{tpu_custom_call.1} parent=1 // pred_check
      _
    $region47: #{tpu_custom_call.1} parent=1 // pred_check_branch
      %1647 = sbr.rel (0) target = $region49
    $region48: #{tpu_custom_call.1} parent=1 // pred_region
      %s1649 = ssub.s32 2048, 2048
      %1650 = vsyncadd [#allocation4], %s1649
      %s1651 = sshll.u32 [#allocation10], 4
      %s1652 = int_to_ptr.vmem [resolvable:$true] %s1651
      %1657 = dma.vmem_to_hbm [thread:$0]  %s1652, 2048, %s7, [#allocation4], 1024, 1024, 64
    $region49: #{tpu_custom_call.1} parent=1 // pred_fallthru
      _
    // Predicated region
    $region50: #{tpu_custom_call.1} parent=1 // pred_check
      _
    $region51: #{tpu_custom_call.1} parent=1 // pred_check_branch
      %1659 = sbr.rel (0) target = $region53
    $region52: #{tpu_custom_call.1} parent=1 // pred_region
      %1660 = dma.done [#allocation4], 2048
    $region53: #{tpu_custom_call.1} parent=1 // pred_fallthru
      _
    %1661 = vsyncpa [#allocation3], 1
    %1662 = vsyncpa [#allocation6], 1
    %1663 = vsyncpa [#allocation9], 1
    %1664 = vsyncpa [#allocation4], 1

</llo_original>
